<compile_context>
chip_gen: v6e
topology: v6e:2x2x1
jax: 0.10.0
libtpu: 0.0.40
codegen_flags: <defaults>
</compile_context>

<pallas_src>
import functools
import math

import jax
import jax.numpy as jnp
from jax.experimental import pallas as pl
from jax.experimental.pallas import tpu as pltpu

BN_EPS = 1e-5
OUT_PAD = 128        # lane-dense width for the final (B, 1) output


# ----------------------------------------------------------------------------
# Fused Pallas kernel: bottom MLP + interaction + top MLP for one batch tile
# ----------------------------------------------------------------------------
def _dlrm_fused_kernel(*refs, n_bottom, n_top_rest):
    """Ref order:
        dense, emb,
        bottom layers:            (w, b) * n_bottom,
        interaction / top layer1:  Rd, Re, Cd, Ce, W1d, W1i, b1,
        remaining top hidden:     (w, b) * n_top_rest,
        final layer (padded):     w_pad, b_pad,
        out_ref
    All weights are pre-transposed to (Din, Dout) and BN-scale folded.
    """
    o_ref = refs[-1]
    it = iter(refs[:-1])

    x = next(it)[...]            # dense features   (bt, Dd)
    emb = next(it)[...]          # embeddings       (bt, De)

    # ---- bottom MLP: Linear (+ folded BN) + ReLU per layer ----------------
    for _ in range(n_bottom):
        w = next(it)[...]
        b = next(it)[...]
        x = jnp.maximum(
            jnp.dot(x, w, preferred_element_type=jnp.float32) + b, 0.0)
    dense_out = x                # (bt, D0)

    # ---- feature interaction fused with the first top-MLP layer -----------
    # left[b,k]  = feat[b, row(k)],  right[b,k] = feat[b, col(k)]
    # (row/col over the upper triangle incl. diagonal, row-major order).
    rd = next(it)[...]; re = next(it)[...]
    cd = next(it)[...]; ce = next(it)[...]
    w1d = next(it)[...]; w1i = next(it)[...]; b1 = next(it)[...]

    left = (jnp.dot(dense_out, rd, preferred_element_type=jnp.float32)
            + jnp.dot(emb, re, preferred_element_type=jnp.float32))
    right = (jnp.dot(dense_out, cd, preferred_element_type=jnp.float32)
             + jnp.dot(emb, ce, preferred_element_type=jnp.float32))
    inter = left * right         # (bt, F*(F+1)//2), stays in VMEM/vregs

    z = (jnp.dot(dense_out, w1d, preferred_element_type=jnp.float32)
         + jnp.dot(inter, w1i, preferred_element_type=jnp.float32) + b1)
    x = jnp.maximum(z, 0.0)

    # ---- remaining hidden top-MLP layers -----------------------------------
    for _ in range(n_top_rest):
        w = next(it)[...]
        b = next(it)[...]
        x = jnp.maximum(
            jnp.dot(x, w, preferred_element_type=jnp.float32) + b, 0.0)

    # ---- final Linear(top[-1], 1), padded to 128 lanes (lane-dense store) --
    w = next(it)[...]
    b = next(it)[...]
    o_ref[...] = jnp.dot(x, w, preferred_element_type=jnp.float32) + b


# ----------------------------------------------------------------------------
# Parameter construction (matches torch init recipes) and inference prep
# ----------------------------------------------------------------------------
def kaiming_linear(key, d_in, d_out):
    std = math.sqrt(2.0 / d_in)               # kaiming_normal_, fan_in, relu
    w = jax.random.normal(key, (d_out, d_in), jnp.float32) * std
    b = jnp.zeros((d_out,), jnp.float32)      # nn.init.zeros_
    return w, b


def build_params(key, num_dense, embedding_sizes, bottom_dims, top_dims):
    params = {}
    keys = jax.random.split(key, 16)
    ki = iter(keys)

    # Embedding tables: normal(0, 0.1)
    params["emb"] = [
        jax.random.normal(next(ki), (n_cat, e_dim), jnp.float32) * 0.1
        for (n_cat, e_dim) in embedding_sizes
    ]
    emb_out = sum(e for _, e in embedding_sizes)

    # Bottom MLP
    bot = []
    dims = [num_dense] + list(bottom_dims)
    for i in range(1, len(dims)):
        bot.append(kaiming_linear(next(ki), dims[i - 1], dims[i]))
    params["bottom"] = bot

    # Top MLP
    F = bottom_dims[-1] + emb_out
    inter_out = F * (F + 1) // 2
    top = []
    dims = [bottom_dims[-1] + inter_out] + list(top_dims)
    for i in range(1, len(dims)):
        top.append(kaiming_linear(next(ki), dims[i - 1], dims[i]))
    top.append(kaiming_linear(next(ki), top_dims[-1], 1))
    params["top"] = top
    params["F"] = F
    return params


def prepare_fused_params(params, bottom_dims):
    """One-time prep: transpose weights, fold the BN scale, build the
    triangle-selector matrices and pad the final layer to OUT_PAD lanes."""
    s = jnp.float32(1.0 / math.sqrt(1.0 + BN_EPS))
    flat = []

    # Bottom MLP (Linear + BN + ReLU): fold BN scale into W and b.
    for (w, b) in params["bottom"]:
        flat.append((w.T * s).astype(jnp.float32))               # (Din, Dout)
        flat.append((b * s).reshape(1, -1).astype(jnp.float32))  # (1, Dout)

    D0 = bottom_dims[-1]
    F = params["F"]
    inter_out = F * (F + 1) // 2

    # Triangle-selector matrices (row-major upper triangle incl. diagonal,
    # identical ordering to torch's mask.bool() selection).
    iu, ju = jnp.triu_indices(F)
    k = jnp.arange(inter_out)
    R = jnp.zeros((F, inter_out), jnp.float32).at[iu, k].set(1.0)
    C = jnp.zeros((F, inter_out), jnp.float32).at[ju, k].set(1.0)
    flat += [R[:D0], R[D0:], C[:D0], C[D0:]]      # split: feat = [dense|emb]

    # First top-MLP layer, split into dense-part and interaction-part weights.
    w1, b1 = params["top"][0]                      # (T0, D0+inter_out), (T0,)
    flat.append((w1[:, :D0].T * s).astype(jnp.float32))     # (D0, T0)
    flat.append((w1[:, D0:].T * s).astype(jnp.float32))     # (inter_out, T0)
    flat.append((b1 * s).reshape(1, -1).astype(jnp.float32))

    # Remaining hidden top layers.
    for (w, b) in params["top"][1:-1]:
        flat.append((w.T * s).astype(jnp.float32))
        flat.append((b * s).reshape(1, -1).astype(jnp.float32))

    # Final Linear(top[-1], 1): pad output dim to OUT_PAD for lane-dense stores.
    wl, bl = params["top"][-1]                     # (1, top_last), (1,)
    w_pad = jnp.zeros((wl.shape[1], OUT_PAD), jnp.float32).at[:, 0].set(wl[0])
    b_pad = jnp.zeros((1, OUT_PAD), jnp.float32).at[0, 0].set(bl[0])
    flat += [w_pad, b_pad]
    return flat


# ----------------------------------------------------------------------------
# Forward pass
# ----------------------------------------------------------------------------
def dlrm_forward(params, flat_w, dense_features, sparse_features, *,
                 batch_tile=256):
    """Fused DLRM forward.  `flat_w` comes from prepare_fused_params."""
    # TODO(synk): pull the embedding row gather into the kernel via
    # scalar-prefetched indices + manual DMA; kept as an XLA gather for now.
    embs = [t[sparse_features[:, i]] for i, t in enumerate(params["emb"])]
    emb = jnp.concatenate(embs, axis=1).astype(jnp.float32)
    dense = dense_features.astype(jnp.float32)

    B = dense.shape[0]
    # Batch tile: multiple of 8 sublanes.  batch_tile should be sized so the
    # tile's activations (+ double buffering) fit VMEM — v7x has only 64 MiB,
    # so keep batch_tile <= 512 for large interaction widths.
    bt = max(8, min(batch_tile, B))
    bt = (bt // 8) * 8
    Bp = ((B + bt - 1) // bt) * bt
    if Bp != B:
        dense = jnp.pad(dense, ((0, Bp - B), (0, 0)))
        emb = jnp.pad(emb, ((0, Bp - B), (0, 0)))

    n_bottom = len(params["bottom"])
    n_top_rest = len(params["top"]) - 2       # hidden top layers after layer 1

    in_specs = [
        pl.BlockSpec((bt, dense.shape[1]), lambda i: (i, 0)),
        pl.BlockSpec((bt, emb.shape[1]), lambda i: (i, 0)),
    ]
    # Weights: full-array blocks, constant block index => fetched once and
    # kept resident across the batch grid.
    in_specs += [pl.BlockSpec(w.shape, lambda i: (0, 0)) for w in flat_w]

    kernel = functools.partial(_dlrm_fused_kernel,
                               n_bottom=n_bottom, n_top_rest=n_top_rest)
    out = pl.pallas_call(
        kernel,
        out_shape=jax.ShapeDtypeStruct((Bp, OUT_PAD), jnp.float32),
        grid=(Bp // bt,),
        in_specs=in_specs,
        out_specs=pl.BlockSpec((bt, OUT_PAD), lambda i: (i, 0)),
        compiler_params=pltpu.CompilerParams(
            dimension_semantics=("parallel",)),
    )(dense, emb, *flat_w)
    return out[:B, :1]


# ----------------------------------------------------------------------------
# Pure-JAX reference (mirrors the torch module in eval mode)
# ----------------------------------------------------------------------------
def dlrm_forward_ref(params, dense_features, sparse_features):
    scale = 1.0 / math.sqrt(1.0 + BN_EPS)
    x = dense_features.astype(jnp.float32)
    for (w, b) in params["bottom"]:
        x = jnp.maximum((x @ w.T + b) * scale, 0.0)
    dense_output = x
    embs = [t[sparse_features[:, i]] for i, t in enumerate(params["emb"])]
    feat = jnp.concatenate([dense_output] + embs, axis=1)
    B, F = feat.shape
    outer = feat[:, :, None] * feat[:, None, :]
    iu, ju = jnp.triu_indices(F)
    interaction = outer.reshape(B, F * F)[:, iu * F + ju]
    x = jnp.concatenate([dense_output, interaction], axis=1)
    for (w, b) in params["top"][:-1]:
        x = jnp.maximum((x @ w.T + b) * scale, 0.0)
    w, b = params["top"][-1]
    return x @ w.T + b


# ----------------------------------------------------------------------------
if __name__ == "__main__":
    key = jax.random.PRNGKey(0)

    # Small, forward-consistent configuration.
    batch = 32
    num_dense_features = 16
    embedding_sizes = [(10, 8), (20, 8)]          # emb_out = 16  ->  F = 32
    bottom_mlp_dims = [32, 16]
    top_mlp_dims = [32, 16]

    pkey, dkey, skey0, skey1 = jax.random.split(key, 4)
    params = build_params(pkey, num_dense_features, embedding_sizes,
                          bottom_mlp_dims, top_mlp_dims)
    flat_w = prepare_fused_params(params, bottom_mlp_dims)

    dense_features = jax.random.normal(dkey, (batch, num_dense_features),
                                       jnp.float32)
    sparse_features = jnp.stack(
        [
            jax.random.randint(skey0, (batch,), 0, embedding_sizes[0][0]),
            jax.random.randint(skey1, (batch,), 0, embedding_sizes[1][0]),
        ],
        axis=1,
    )  # (batch, num_sparse) int32

    # batch_tile=8 so the demo actually exercises the batch grid (grid=(4,)).
    fwd = jax.jit(functools.partial(dlrm_forward, batch_tile=8))
    out = fwd(params, flat_w, dense_features, sparse_features)
    out = jax.block_until_ready(out)

    ref = dlrm_forward_ref(params, dense_features, sparse_features)
    assert out.shape == (batch, 1)
    assert jnp.allclose(out, ref, atol=1e-3, rtol=1e-3), "mismatch vs reference"

    print("KERNEL_OK")
</pallas_src>

<mosaic_0001>
module attributes {stable_mosaic.version = 11 : i64} {
  func.func @_dlrm_fused_kernel(%arg0: i32, %arg1: memref<8x16xf32, #tpu.memory_space<vmem>>, %arg2: memref<8x16xf32, #tpu.memory_space<vmem>>, %arg3: memref<16x32xf32, #tpu.memory_space<vmem>>, %arg4: memref<1x32xf32, #tpu.memory_space<vmem>>, %arg5: memref<32x16xf32, #tpu.memory_space<vmem>>, %arg6: memref<1x16xf32, #tpu.memory_space<vmem>>, %arg7: memref<16x528xf32, #tpu.memory_space<vmem>>, %arg8: memref<16x528xf32, #tpu.memory_space<vmem>>, %arg9: memref<16x528xf32, #tpu.memory_space<vmem>>, %arg10: memref<16x528xf32, #tpu.memory_space<vmem>>, %arg11: memref<16x32xf32, #tpu.memory_space<vmem>>, %arg12: memref<528x32xf32, #tpu.memory_space<vmem>>, %arg13: memref<1x32xf32, #tpu.memory_space<vmem>>, %arg14: memref<32x16xf32, #tpu.memory_space<vmem>>, %arg15: memref<1x16xf32, #tpu.memory_space<vmem>>, %arg16: memref<16x128xf32, #tpu.memory_space<vmem>>, %arg17: memref<1x128xf32, #tpu.memory_space<vmem>>, %arg18: memref<8x128xf32, #tpu.memory_space<vmem>>) attributes {dimension_semantics = [#tpu.dimension_semantics<parallel>], iteration_bounds = array<i64: 4>, scalar_prefetch = 0 : i64, scratch_operands = 0 : i64, tpu.core_type = #tpu.core_type<tc>, window_params = [{transform_indices = @transform_0, window_bounds = array<i64: 8, 16>}, {transform_indices = @transform_1, window_bounds = array<i64: 8, 16>}, {pipeline_mode = #tpu.pipeline_mode<synchronous>, transform_indices = @transform_2, window_bounds = array<i64: 16, 32>}, {pipeline_mode = #tpu.pipeline_mode<synchronous>, transform_indices = @transform_3, window_bounds = array<i64: 1, 32>}, {pipeline_mode = #tpu.pipeline_mode<synchronous>, transform_indices = @transform_4, window_bounds = array<i64: 32, 16>}, {pipeline_mode = #tpu.pipeline_mode<synchronous>, transform_indices = @transform_5, window_bounds = array<i64: 1, 16>}, {pipeline_mode = #tpu.pipeline_mode<synchronous>, transform_indices = @transform_6, window_bounds = array<i64: 16, 528>}, {pipeline_mode = #tpu.pipeline_mode<synchronous>, transform_indices = @transform_7, window_bounds = array<i64: 16, 528>}, {pipeline_mode = #tpu.pipeline_mode<synchronous>, transform_indices = @transform_8, window_bounds = array<i64: 16, 528>}, {pipeline_mode = #tpu.pipeline_mode<synchronous>, transform_indices = @transform_9, window_bounds = array<i64: 16, 528>}, {pipeline_mode = #tpu.pipeline_mode<synchronous>, transform_indices = @transform_10, window_bounds = array<i64: 16, 32>}, {pipeline_mode = #tpu.pipeline_mode<synchronous>, transform_indices = @transform_11, window_bounds = array<i64: 528, 32>}, {pipeline_mode = #tpu.pipeline_mode<synchronous>, transform_indices = @transform_12, window_bounds = array<i64: 1, 32>}, {pipeline_mode = #tpu.pipeline_mode<synchronous>, transform_indices = @transform_13, window_bounds = array<i64: 32, 16>}, {pipeline_mode = #tpu.pipeline_mode<synchronous>, transform_indices = @transform_14, window_bounds = array<i64: 1, 16>}, {pipeline_mode = #tpu.pipeline_mode<synchronous>, transform_indices = @transform_15, window_bounds = array<i64: 16, 128>}, {pipeline_mode = #tpu.pipeline_mode<synchronous>, transform_indices = @transform_16, window_bounds = array<i64: 1, 128>}, {transform_indices = @transform_17, window_bounds = array<i64: 8, 128>}]} {
    %c0 = arith.constant 0 : index
    %c0_0 = arith.constant 0 : index
    %0 = vector.load %arg1[%c0, %c0_0] : memref<8x16xf32, #tpu.memory_space<vmem>>, vector<8x16xf32>
    %c0_1 = arith.constant 0 : index
    %c0_2 = arith.constant 0 : index
    %1 = vector.load %arg2[%c0_1, %c0_2] : memref<8x16xf32, #tpu.memory_space<vmem>>, vector<8x16xf32>
    %c0_3 = arith.constant 0 : index
    %c0_4 = arith.constant 0 : index
    %2 = vector.load %arg3[%c0_3, %c0_4] : memref<16x32xf32, #tpu.memory_space<vmem>>, vector<16x32xf32>
    %c0_5 = arith.constant 0 : index
    %c0_6 = arith.constant 0 : index
    %3 = vector.load %arg4[%c0_5, %c0_6] : memref<1x32xf32, #tpu.memory_space<vmem>>, vector<1x32xf32>
    %cst = arith.constant dense<0.000000e+00> : vector<8x32xf32>
    %4 = tpu.matmul %0, %2, %cst {dimension_numbers = #tpu.dot_dimension_numbers<[1], [0], [0], [1], [0, 0, 1, 1], [], []>} : vector<8x16xf32>, vector<16x32xf32>, vector<8x32xf32> -> vector<8x32xf32>
    %5 = vector.broadcast %3 : vector<1x32xf32> to vector<8x32xf32>
    %6 = arith.addf %4, %5 : vector<8x32xf32>
    %cst_7 = arith.constant 0.000000e+00 : f32
    %7 = vector.broadcast %cst_7 : f32 to vector<8x32xf32>
    %8 = arith.maximumf %6, %7 : vector<8x32xf32>
    %c0_8 = arith.constant 0 : index
    %c0_9 = arith.constant 0 : index
    %9 = vector.load %arg5[%c0_8, %c0_9] : memref<32x16xf32, #tpu.memory_space<vmem>>, vector<32x16xf32>
    %c0_10 = arith.constant 0 : index
    %c0_11 = arith.constant 0 : index
    %10 = vector.load %arg6[%c0_10, %c0_11] : memref<1x16xf32, #tpu.memory_space<vmem>>, vector<1x16xf32>
    %cst_12 = arith.constant dense<0.000000e+00> : vector<8x16xf32>
    %11 = tpu.matmul %8, %9, %cst_12 {dimension_numbers = #tpu.dot_dimension_numbers<[1], [0], [0], [1], [0, 0, 1, 1], [], []>} : vector<8x32xf32>, vector<32x16xf32>, vector<8x16xf32> -> vector<8x16xf32>
    %12 = vector.broadcast %10 : vector<1x16xf32> to vector<8x16xf32>
    %13 = arith.addf %11, %12 : vector<8x16xf32>
    %cst_13 = arith.constant 0.000000e+00 : f32
    %14 = vector.broadcast %cst_13 : f32 to vector<8x16xf32>
    %15 = arith.maximumf %13, %14 : vector<8x16xf32>
    %c0_14 = arith.constant 0 : index
    %c0_15 = arith.constant 0 : index
    %16 = vector.load %arg7[%c0_14, %c0_15] : memref<16x528xf32, #tpu.memory_space<vmem>>, vector<16x528xf32>
    %c0_16 = arith.constant 0 : index
    %c0_17 = arith.constant 0 : index
    %17 = vector.load %arg8[%c0_16, %c0_17] : memref<16x528xf32, #tpu.memory_space<vmem>>, vector<16x528xf32>
    %c0_18 = arith.constant 0 : index
    %c0_19 = arith.constant 0 : index
    %18 = vector.load %arg9[%c0_18, %c0_19] : memref<16x528xf32, #tpu.memory_space<vmem>>, vector<16x528xf32>
    %c0_20 = arith.constant 0 : index
    %c0_21 = arith.constant 0 : index
    %19 = vector.load %arg10[%c0_20, %c0_21] : memref<16x528xf32, #tpu.memory_space<vmem>>, vector<16x528xf32>
    %c0_22 = arith.constant 0 : index
    %c0_23 = arith.constant 0 : index
    %20 = vector.load %arg11[%c0_22, %c0_23] : memref<16x32xf32, #tpu.memory_space<vmem>>, vector<16x32xf32>
    %c0_24 = arith.constant 0 : index
    %c0_25 = arith.constant 0 : index
    %21 = vector.load %arg12[%c0_24, %c0_25] : memref<528x32xf32, #tpu.memory_space<vmem>>, vector<528x32xf32>
    %c0_26 = arith.constant 0 : index
    %c0_27 = arith.constant 0 : index
    %22 = vector.load %arg13[%c0_26, %c0_27] : memref<1x32xf32, #tpu.memory_space<vmem>>, vector<1x32xf32>
    %cst_28 = arith.constant dense<0.000000e+00> : vector<8x528xf32>
    %23 = tpu.matmul %15, %16, %cst_28 {dimension_numbers = #tpu.dot_dimension_numbers<[1], [0], [0], [1], [0, 0, 1, 1], [], []>} : vector<8x16xf32>, vector<16x528xf32>, vector<8x528xf32> -> vector<8x528xf32>
    %cst_29 = arith.constant dense<0.000000e+00> : vector<8x528xf32>
    %24 = tpu.matmul %1, %17, %cst_29 {dimension_numbers = #tpu.dot_dimension_numbers<[1], [0], [0], [1], [0, 0, 1, 1], [], []>} : vector<8x16xf32>, vector<16x528xf32>, vector<8x528xf32> -> vector<8x528xf32>
    %25 = arith.addf %23, %24 : vector<8x528xf32>
    %cst_30 = arith.constant dense<0.000000e+00> : vector<8x528xf32>
    %26 = tpu.matmul %15, %18, %cst_30 {dimension_numbers = #tpu.dot_dimension_numbers<[1], [0], [0], [1], [0, 0, 1, 1], [], []>} : vector<8x16xf32>, vector<16x528xf32>, vector<8x528xf32> -> vector<8x528xf32>
    %cst_31 = arith.constant dense<0.000000e+00> : vector<8x528xf32>
    %27 = tpu.matmul %1, %19, %cst_31 {dimension_numbers = #tpu.dot_dimension_numbers<[1], [0], [0], [1], [0, 0, 1, 1], [], []>} : vector<8x16xf32>, vector<16x528xf32>, vector<8x528xf32> -> vector<8x528xf32>
    %28 = arith.addf %26, %27 : vector<8x528xf32>
    %29 = arith.mulf %25, %28 : vector<8x528xf32>
    %cst_32 = arith.constant dense<0.000000e+00> : vector<8x32xf32>
    %30 = tpu.matmul %15, %20, %cst_32 {dimension_numbers = #tpu.dot_dimension_numbers<[1], [0], [0], [1], [0, 0, 1, 1], [], []>} : vector<8x16xf32>, vector<16x32xf32>, vector<8x32xf32> -> vector<8x32xf32>
    %cst_33 = arith.constant dense<0.000000e+00> : vector<8x32xf32>
    %31 = tpu.matmul %29, %21, %cst_33 {dimension_numbers = #tpu.dot_dimension_numbers<[1], [0], [0], [1], [0, 0, 1, 1], [], []>} : vector<8x528xf32>, vector<528x32xf32>, vector<8x32xf32> -> vector<8x32xf32>
    %32 = arith.addf %30, %31 : vector<8x32xf32>
    %33 = vector.broadcast %22 : vector<1x32xf32> to vector<8x32xf32>
    %34 = arith.addf %32, %33 : vector<8x32xf32>
    %cst_34 = arith.constant 0.000000e+00 : f32
    %35 = vector.broadcast %cst_34 : f32 to vector<8x32xf32>
    %36 = arith.maximumf %34, %35 : vector<8x32xf32>
    %c0_35 = arith.constant 0 : index
    %c0_36 = arith.constant 0 : index
    %37 = vector.load %arg14[%c0_35, %c0_36] : memref<32x16xf32, #tpu.memory_space<vmem>>, vector<32x16xf32>
    %c0_37 = arith.constant 0 : index
    %c0_38 = arith.constant 0 : index
    %38 = vector.load %arg15[%c0_37, %c0_38] : memref<1x16xf32, #tpu.memory_space<vmem>>, vector<1x16xf32>
    %cst_39 = arith.constant dense<0.000000e+00> : vector<8x16xf32>
    %39 = tpu.matmul %36, %37, %cst_39 {dimension_numbers = #tpu.dot_dimension_numbers<[1], [0], [0], [1], [0, 0, 1, 1], [], []>} : vector<8x32xf32>, vector<32x16xf32>, vector<8x16xf32> -> vector<8x16xf32>
    %40 = vector.broadcast %38 : vector<1x16xf32> to vector<8x16xf32>
    %41 = arith.addf %39, %40 : vector<8x16xf32>
    %cst_40 = arith.constant 0.000000e+00 : f32
    %42 = vector.broadcast %cst_40 : f32 to vector<8x16xf32>
    %43 = arith.maximumf %41, %42 : vector<8x16xf32>
    %c0_41 = arith.constant 0 : index
    %c0_42 = arith.constant 0 : index
    %44 = vector.load %arg16[%c0_41, %c0_42] : memref<16x128xf32, #tpu.memory_space<vmem>>, vector<16x128xf32>
    %c0_43 = arith.constant 0 : index
    %c0_44 = arith.constant 0 : index
    %45 = vector.load %arg17[%c0_43, %c0_44] : memref<1x128xf32, #tpu.memory_space<vmem>>, vector<1x128xf32>
    %cst_45 = arith.constant dense<0.000000e+00> : vector<8x128xf32>
    %46 = tpu.matmul %43, %44, %cst_45 {dimension_numbers = #tpu.dot_dimension_numbers<[1], [0], [0], [1], [0, 0, 1, 1], [], []>} : vector<8x16xf32>, vector<16x128xf32>, vector<8x128xf32> -> vector<8x128xf32>
    %47 = vector.broadcast %45 : vector<1x128xf32> to vector<8x128xf32>
    %48 = arith.addf %46, %47 : vector<8x128xf32>
    %c0_46 = arith.constant 0 : index
    %c0_47 = arith.constant 0 : index
    %49 = vector.load %arg18[%c0_46, %c0_47] : memref<8x128xf32, #tpu.memory_space<vmem>>, vector<8x128xf32>
    tpu.vector_store %arg18[%c0_46, %c0_47], %48 {strides = array<i32>} : memref<8x128xf32, #tpu.memory_space<vmem>>, vector<8x128xf32>,
    return
  }
  func.func @transform_0(%arg0: i32) -> (i32, i32) {
    %c0_i32 = arith.constant 0 : i32
    %c0_i32_0 = arith.constant 0 : i32
    return %arg0, %c0_i32 : i32, i32
  }
  func.func @transform_1(%arg0: i32) -> (i32, i32) {
    %c0_i32 = arith.constant 0 : i32
    %c0_i32_0 = arith.constant 0 : i32
    return %arg0, %c0_i32 : i32, i32
  }
  func.func @transform_2(%arg0: i32) -> (i32, i32) {
    %c0_i32 = arith.constant 0 : i32
    %c0_i32_0 = arith.constant 0 : i32
    %c0_i32_1 = arith.constant 0 : i32
    return %c0_i32, %c0_i32_0 : i32, i32
  }
  func.func @transform_3(%arg0: i32) -> (i32, i32) {
    %c0_i32 = arith.constant 0 : i32
    %c0_i32_0 = arith.constant 0 : i32
    %c0_i32_1 = arith.constant 0 : i32
    return %c0_i32, %c0_i32_0 : i32, i32
  }
  func.func @transform_4(%arg0: i32) -> (i32, i32) {
    %c0_i32 = arith.constant 0 : i32
    %c0_i32_0 = arith.constant 0 : i32
    %c0_i32_1 = arith.constant 0 : i32
    return %c0_i32, %c0_i32_0 : i32, i32
  }
  func.func @transform_5(%arg0: i32) -> (i32, i32) {
    %c0_i32 = arith.constant 0 : i32
    %c0_i32_0 = arith.constant 0 : i32
    %c0_i32_1 = arith.constant 0 : i32
    return %c0_i32, %c0_i32_0 : i32, i32
  }
  func.func @transform_6(%arg0: i32) -> (i32, i32) {
    %c0_i32 = arith.constant 0 : i32
    %c0_i32_0 = arith.constant 0 : i32
    %c0_i32_1 = arith.constant 0 : i32
    return %c0_i32, %c0_i32_0 : i32, i32
  }
  func.func @transform_7(%arg0: i32) -> (i32, i32) {
    %c0_i32 = arith.constant 0 : i32
    %c0_i32_0 = arith.constant 0 : i32
    %c0_i32_1 = arith.constant 0 : i32
    return %c0_i32, %c0_i32_0 : i32, i32
  }
  func.func @transform_8(%arg0: i32) -> (i32, i32) {
    %c0_i32 = arith.constant 0 : i32
    %c0_i32_0 = arith.constant 0 : i32
    %c0_i32_1 = arith.constant 0 : i32
    return %c0_i32, %c0_i32_0 : i32, i32
  }
  func.func @transform_9(%arg0: i32) -> (i32, i32) {
    %c0_i32 = arith.constant 0 : i32
    %c0_i32_0 = arith.constant 0 : i32
    %c0_i32_1 = arith.constant 0 : i32
    return %c0_i32, %c0_i32_0 : i32, i32
  }
  func.func @transform_10(%arg0: i32) -> (i32, i32) {
    %c0_i32 = arith.constant 0 : i32
    %c0_i32_0 = arith.constant 0 : i32
    %c0_i32_1 = arith.constant 0 : i32
    return %c0_i32, %c0_i32_0 : i32, i32
  }
  func.func @transform_11(%arg0: i32) -> (i32, i32) {
    %c0_i32 = arith.constant 0 : i32
    %c0_i32_0 = arith.constant 0 : i32
    %c0_i32_1 = arith.constant 0 : i32
    return %c0_i32, %c0_i32_0 : i32, i32
  }
  func.func @transform_12(%arg0: i32) -> (i32, i32) {
    %c0_i32 = arith.constant 0 : i32
    %c0_i32_0 = arith.constant 0 : i32
    %c0_i32_1 = arith.constant 0 : i32
    return %c0_i32, %c0_i32_0 : i32, i32
  }
  func.func @transform_13(%arg0: i32) -> (i32, i32) {
    %c0_i32 = arith.constant 0 : i32
    %c0_i32_0 = arith.constant 0 : i32
    %c0_i32_1 = arith.constant 0 : i32
    return %c0_i32, %c0_i32_0 : i32, i32
  }
  func.func @transform_14(%arg0: i32) -> (i32, i32) {
    %c0_i32 = arith.constant 0 : i32
    %c0_i32_0 = arith.constant 0 : i32
    %c0_i32_1 = arith.constant 0 : i32
    return %c0_i32, %c0_i32_0 : i32, i32
  }
  func.func @transform_15(%arg0: i32) -> (i32, i32) {
    %c0_i32 = arith.constant 0 : i32
    %c0_i32_0 = arith.constant 0 : i32
    %c0_i32_1 = arith.constant 0 : i32
    return %c0_i32, %c0_i32_0 : i32, i32
  }
  func.func @transform_16(%arg0: i32) -> (i32, i32) {
    %c0_i32 = arith.constant 0 : i32
    %c0_i32_0 = arith.constant 0 : i32
    %c0_i32_1 = arith.constant 0 : i32
    return %c0_i32, %c0_i32_0 : i32, i32
  }
  func.func @transform_17(%arg0: i32) -> (i32, i32) {
    %c0_i32 = arith.constant 0 : i32
    %c0_i32_0 = arith.constant 0 : i32
    return %arg0, %c0_i32 : i32, i32
  }
}

</mosaic_0001>

<llo_original>
// kernel: dlrm_forward.1
$region0: #{dlrm_forward.1}
  #allocation0 [shape = 'u32[]', space=smem, size = 0x4, offset = 0x4, fixed_abs, tag = 'smem constant byte address 0x4 - core index']
  #allocation1 [shape = 'u32[144,128]{1,0:T(1,128)}', space=vmem, size = 0x12000, scoped, tag = 'internal scratch']
  %s0 = inlined_call_operand.vmem [shape: f32[32,16], index: 0, kind: input, shape index: {}]
  %s1 = inlined_call_operand.vmem [shape: f32[32,16], index: 1, kind: input, shape index: {}]
  %s2 = inlined_call_operand.vmem [shape: f32[16,32], index: 2, kind: input, shape index: {}]
  %s3 = inlined_call_operand.vmem [shape: f32[1,32], index: 3, kind: input, shape index: {}]
  %s4 = inlined_call_operand.vmem [shape: f32[32,16], index: 4, kind: input, shape index: {}]
  %s5 = inlined_call_operand.vmem [shape: f32[1,16], index: 5, kind: input, shape index: {}]
  %s6 = inlined_call_operand.vmem [shape: f32[16,528], index: 6, kind: input, shape index: {}]
  %s7 = inlined_call_operand.vmem [shape: f32[16,528], index: 7, kind: input, shape index: {}]
  %s8 = inlined_call_operand.vmem [shape: f32[16,528], index: 8, kind: input, shape index: {}]
  %s9 = inlined_call_operand.vmem [shape: f32[16,528], index: 9, kind: input, shape index: {}]
  %s10 = inlined_call_operand.vmem [shape: f32[16,32], index: 10, kind: input, shape index: {}]
  %s11 = inlined_call_operand.vmem [shape: f32[528,32], index: 11, kind: input, shape index: {}]
  %s12 = inlined_call_operand.vmem [shape: f32[1,32], index: 12, kind: input, shape index: {}]
  %s13 = inlined_call_operand.vmem [shape: f32[32,16], index: 13, kind: input, shape index: {}]
  %s14 = inlined_call_operand.vmem [shape: f32[1,16], index: 14, kind: input, shape index: {}]
  %s15 = inlined_call_operand.vmem [shape: f32[16,128], index: 15, kind: input, shape index: {}]
  %s16 = inlined_call_operand.vmem [shape: f32[1,128], index: 16, kind: input, shape index: {}]
  %s17 = inlined_call_operand.vmem [shape: f32[32,128], index: 17, kind: output, shape index: {}]
  %s18 = sld [smem:[#allocation0]]
  $region101: #{dlrm_forward.1} parent=0
    _
  %s20 = ssub.s32 1, %s18
  %s21 = scalar_select 0, %s20, %s18
  loop: start=0, step=1, limit=6
  $region2: #{dlrm_forward.1} parent=0 // loop_pre_header
    _
  $region3: #{dlrm_forward.1} parent=0 // loop_header
    %s23 = sphi 0, %s27
    %p24 = scmp.ge.s32.totalorder %s23, 6
    %s33 = sphi 0, %s35
    %s36 = sphi 0, %s33
    %s37 = sphi 0, %s36
    %s53 = sphi 0, %s37
    %s59 = sphi 0, %s61
    %s62 = sphi 0, %s59
    %s63 = sphi 0, %s62
    %s79 = sphi 0, %s63
    %s83 = sphi 0, %s83
    %s85 = sphi 0, %s83
    %s86 = sphi 0, %s85
    %s100 = sphi 0, %s86
    %s104 = sphi 0, %s104
    %s106 = sphi 0, %s104
    %s107 = sphi 0, %s106
    %s121 = sphi 0, %s107
    %s125 = sphi 0, %s125
    %s127 = sphi 0, %s125
    %s128 = sphi 0, %s127
    %s142 = sphi 0, %s128
    %s146 = sphi 0, %s146
    %s148 = sphi 0, %s146
    %s149 = sphi 0, %s148
    %s163 = sphi 0, %s149
    %s167 = sphi 0, %s167
    %s169 = sphi 0, %s167
    %s170 = sphi 0, %s169
    %s184 = sphi 0, %s170
    %s188 = sphi 0, %s188
    %s190 = sphi 0, %s188
    %s191 = sphi 0, %s190
    %s205 = sphi 0, %s191
    %s209 = sphi 0, %s209
    %s211 = sphi 0, %s209
    %s212 = sphi 0, %s211
    %s226 = sphi 0, %s212
    %s230 = sphi 0, %s230
    %s232 = sphi 0, %s230
    %s233 = sphi 0, %s232
    %s247 = sphi 0, %s233
    %s251 = sphi 0, %s251
    %s253 = sphi 0, %s251
    %s254 = sphi 0, %s253
    %s268 = sphi 0, %s254
    %s272 = sphi 0, %s272
    %s274 = sphi 0, %s272
    %s275 = sphi 0, %s274
    %s289 = sphi 0, %s275
    %s293 = sphi 0, %s293
    %s295 = sphi 0, %s293
    %s296 = sphi 0, %s295
    %s310 = sphi 0, %s296
    %s314 = sphi 0, %s314
    %s316 = sphi 0, %s314
    %s317 = sphi 0, %s316
    %s331 = sphi 0, %s317
    %s335 = sphi 0, %s335
    %s337 = sphi 0, %s335
    %s338 = sphi 0, %s337
    %s352 = sphi 0, %s338
    %s356 = sphi 0, %s356
    %s358 = sphi 0, %s356
    %s359 = sphi 0, %s358
    %s373 = sphi 0, %s359
    %s377 = sphi 0, %s377
    %s379 = sphi 0, %s377
    %s380 = sphi 0, %s379
    %s394 = sphi 0, %s380
    %s400 = sphi 0, %s402
    %s403 = sphi 0, %s400
    %s404 = sphi 0, %s403
    %s420 = sphi 0, %s404
  $region4: #{dlrm_forward.1} parent=0 // loop_header_branch
    %26 = sbr.rel (%p24) target = $region8
  $region5: #{dlrm_forward.1} parent=0 // loop_body
    %s28 = ssub.s32 %s23, 1
    %s29 = ssub.s32 %s23, 2
    %s30 = sadd.s32 %s23, 1
    %s31 = ssub.s32 %s23, %s30
    %p32 = scmp.eq.s32.totalorder %s31, 0
    %s34 = sadd.s32 %s33, 1
    %s35 = scalar_select %p32, %s33, %s34
    %p38 = pneg %p32
    %p39 = scmp.eq.s32.totalorder %s23, 3
    %p40 = por %p38, %p39
    %p41 = scmp.ne.s32.totalorder %s33, %s36
    %p42 = scmp.eq.s32.totalorder %s23, 0
    %p43 = por %p41, %p42
    %p44 = scmp.ne.s32.totalorder %s33, %s36
    %p45 = scmp.eq.s32.totalorder %s28, 3
    %p46 = por %p44, %p45
    %p47 = scmp.ne.s32.totalorder %s36, %s37
    %p48 = scmp.eq.s32.totalorder %s28, 0
    %p49 = por %p47, %p48
    %p50 = scmp.ne.s32.totalorder %s36, %s37
    %p51 = scmp.eq.s32.totalorder %s29, 3
    %p52 = por %p50, %p51
    %p54 = scmp.ne.s32.totalorder %s37, %s53
    %p55 = scmp.eq.s32.totalorder %s29, 0
    %p56 = por %p54, %p55
    %s57 = ssub.s32 %s23, %s30
    %p58 = scmp.eq.s32.totalorder %s57, 0
    %s60 = sadd.s32 %s59, 1
    %s61 = scalar_select %p58, %s59, %s60
    %p64 = pneg %p58
    %p65 = scmp.eq.s32.totalorder %s23, 3
    %p66 = por %p64, %p65
    %p67 = scmp.ne.s32.totalorder %s59, %s62
    %p68 = scmp.eq.s32.totalorder %s23, 0
    %p69 = por %p67, %p68
    %p70 = scmp.ne.s32.totalorder %s59, %s62
    %p71 = scmp.eq.s32.totalorder %s28, 3
    %p72 = por %p70, %p71
    %p73 = scmp.ne.s32.totalorder %s62, %s63
    %p74 = scmp.eq.s32.totalorder %s28, 0
    %p75 = por %p73, %p74
    %p76 = scmp.ne.s32.totalorder %s62, %s63
    %p77 = scmp.eq.s32.totalorder %s29, 3
    %p78 = por %p76, %p77
    %p80 = scmp.ne.s32.totalorder %s63, %s79
    %p81 = scmp.eq.s32.totalorder %s29, 0
    %p82 = por %p80, %p81
    %s84 = sadd.s32 %s83, 1
    %p87 = scmp.eq.s32.totalorder %s23, 3
    %p88 = scmp.ne.s32.totalorder %s83, %s85
    %p89 = scmp.eq.s32.totalorder %s23, 0
    %p90 = por %p88, %p89
    %p91 = scmp.ne.s32.totalorder %s83, %s85
    %p92 = scmp.eq.s32.totalorder %s28, 3
    %p93 = por %p91, %p92
    %p94 = scmp.ne.s32.totalorder %s85, %s86
    %p95 = scmp.eq.s32.totalorder %s28, 0
    %p96 = por %p94, %p95
    %p97 = scmp.ne.s32.totalorder %s85, %s86
    %p98 = scmp.eq.s32.totalorder %s29, 3
    %p99 = por %p97, %p98
    %p101 = scmp.ne.s32.totalorder %s86, %s100
    %p102 = scmp.eq.s32.totalorder %s29, 0
    %p103 = por %p101, %p102
    %s105 = sadd.s32 %s104, 1
    %p108 = scmp.eq.s32.totalorder %s23, 3
    %p109 = scmp.ne.s32.totalorder %s104, %s106
    %p110 = scmp.eq.s32.totalorder %s23, 0
    %p111 = por %p109, %p110
    %p112 = scmp.ne.s32.totalorder %s104, %s106
    %p113 = scmp.eq.s32.totalorder %s28, 3
    %p114 = por %p112, %p113
    %p115 = scmp.ne.s32.totalorder %s106, %s107
    %p116 = scmp.eq.s32.totalorder %s28, 0
    %p117 = por %p115, %p116
    %p118 = scmp.ne.s32.totalorder %s106, %s107
    %p119 = scmp.eq.s32.totalorder %s29, 3
    %p120 = por %p118, %p119
    %p122 = scmp.ne.s32.totalorder %s107, %s121
    %p123 = scmp.eq.s32.totalorder %s29, 0
    %p124 = por %p122, %p123
    %s126 = sadd.s32 %s125, 1
    %p129 = scmp.eq.s32.totalorder %s23, 3
    %p130 = scmp.ne.s32.totalorder %s125, %s127
    %p131 = scmp.eq.s32.totalorder %s23, 0
    %p132 = por %p130, %p131
    %p133 = scmp.ne.s32.totalorder %s125, %s127
    %p134 = scmp.eq.s32.totalorder %s28, 3
    %p135 = por %p133, %p134
    %p136 = scmp.ne.s32.totalorder %s127, %s128
    %p137 = scmp.eq.s32.totalorder %s28, 0
    %p138 = por %p136, %p137
    %p139 = scmp.ne.s32.totalorder %s127, %s128
    %p140 = scmp.eq.s32.totalorder %s29, 3
    %p141 = por %p139, %p140
    %p143 = scmp.ne.s32.totalorder %s128, %s142
    %p144 = scmp.eq.s32.totalorder %s29, 0
    %p145 = por %p143, %p144
    %s147 = sadd.s32 %s146, 1
    %p150 = scmp.eq.s32.totalorder %s23, 3
    %p151 = scmp.ne.s32.totalorder %s146, %s148
    %p152 = scmp.eq.s32.totalorder %s23, 0
    %p153 = por %p151, %p152
    %p154 = scmp.ne.s32.totalorder %s146, %s148
    %p155 = scmp.eq.s32.totalorder %s28, 3
    %p156 = por %p154, %p155
    %p157 = scmp.ne.s32.totalorder %s148, %s149
    %p158 = scmp.eq.s32.totalorder %s28, 0
    %p159 = por %p157, %p158
    %p160 = scmp.ne.s32.totalorder %s148, %s149
    %p161 = scmp.eq.s32.totalorder %s29, 3
    %p162 = por %p160, %p161
    %p164 = scmp.ne.s32.totalorder %s149, %s163
    %p165 = scmp.eq.s32.totalorder %s29, 0
    %p166 = por %p164, %p165
    %s168 = sadd.s32 %s167, 1
    %p171 = scmp.eq.s32.totalorder %s23, 3
    %p172 = scmp.ne.s32.totalorder %s167, %s169
    %p173 = scmp.eq.s32.totalorder %s23, 0
    %p174 = por %p172, %p173
    %p175 = scmp.ne.s32.totalorder %s167, %s169
    %p176 = scmp.eq.s32.totalorder %s28, 3
    %p177 = por %p175, %p176
    %p178 = scmp.ne.s32.totalorder %s169, %s170
    %p179 = scmp.eq.s32.totalorder %s28, 0
    %p180 = por %p178, %p179
    %p181 = scmp.ne.s32.totalorder %s169, %s170
    %p182 = scmp.eq.s32.totalorder %s29, 3
    %p183 = por %p181, %p182
    %p185 = scmp.ne.s32.totalorder %s170, %s184
    %p186 = scmp.eq.s32.totalorder %s29, 0
    %p187 = por %p185, %p186
    %s189 = sadd.s32 %s188, 1
    %p192 = scmp.eq.s32.totalorder %s23, 3
    %p193 = scmp.ne.s32.totalorder %s188, %s190
    %p194 = scmp.eq.s32.totalorder %s23, 0
    %p195 = por %p193, %p194
    %p196 = scmp.ne.s32.totalorder %s188, %s190
    %p197 = scmp.eq.s32.totalorder %s28, 3
    %p198 = por %p196, %p197
    %p199 = scmp.ne.s32.totalorder %s190, %s191
    %p200 = scmp.eq.s32.totalorder %s28, 0
    %p201 = por %p199, %p200
    %p202 = scmp.ne.s32.totalorder %s190, %s191
    %p203 = scmp.eq.s32.totalorder %s29, 3
    %p204 = por %p202, %p203
    %p206 = scmp.ne.s32.totalorder %s191, %s205
    %p207 = scmp.eq.s32.totalorder %s29, 0
    %p208 = por %p206, %p207
    %s210 = sadd.s32 %s209, 1
    %p213 = scmp.eq.s32.totalorder %s23, 3
    %p214 = scmp.ne.s32.totalorder %s209, %s211
    %p215 = scmp.eq.s32.totalorder %s23, 0
    %p216 = por %p214, %p215
    %p217 = scmp.ne.s32.totalorder %s209, %s211
    %p218 = scmp.eq.s32.totalorder %s28, 3
    %p219 = por %p217, %p218
    %p220 = scmp.ne.s32.totalorder %s211, %s212
    %p221 = scmp.eq.s32.totalorder %s28, 0
    %p222 = por %p220, %p221
    %p223 = scmp.ne.s32.totalorder %s211, %s212
    %p224 = scmp.eq.s32.totalorder %s29, 3
    %p225 = por %p223, %p224
    %p227 = scmp.ne.s32.totalorder %s212, %s226
    %p228 = scmp.eq.s32.totalorder %s29, 0
    %p229 = por %p227, %p228
    %s231 = sadd.s32 %s230, 1
    %p234 = scmp.eq.s32.totalorder %s23, 3
    %p235 = scmp.ne.s32.totalorder %s230, %s232
    %p236 = scmp.eq.s32.totalorder %s23, 0
    %p237 = por %p235, %p236
    %p238 = scmp.ne.s32.totalorder %s230, %s232
    %p239 = scmp.eq.s32.totalorder %s28, 3
    %p240 = por %p238, %p239
    %p241 = scmp.ne.s32.totalorder %s232, %s233
    %p242 = scmp.eq.s32.totalorder %s28, 0
    %p243 = por %p241, %p242
    %p244 = scmp.ne.s32.totalorder %s232, %s233
    %p245 = scmp.eq.s32.totalorder %s29, 3
    %p246 = por %p244, %p245
    %p248 = scmp.ne.s32.totalorder %s233, %s247
    %p249 = scmp.eq.s32.totalorder %s29, 0
    %p250 = por %p248, %p249
    %s252 = sadd.s32 %s251, 1
    %p255 = scmp.eq.s32.totalorder %s23, 3
    %p256 = scmp.ne.s32.totalorder %s251, %s253
    %p257 = scmp.eq.s32.totalorder %s23, 0
    %p258 = por %p256, %p257
    %p259 = scmp.ne.s32.totalorder %s251, %s253
    %p260 = scmp.eq.s32.totalorder %s28, 3
    %p261 = por %p259, %p260
    %p262 = scmp.ne.s32.totalorder %s253, %s254
    %p263 = scmp.eq.s32.totalorder %s28, 0
    %p264 = por %p262, %p263
    %p265 = scmp.ne.s32.totalorder %s253, %s254
    %p266 = scmp.eq.s32.totalorder %s29, 3
    %p267 = por %p265, %p266
    %p269 = scmp.ne.s32.totalorder %s254, %s268
    %p270 = scmp.eq.s32.totalorder %s29, 0
    %p271 = por %p269, %p270
    %s273 = sadd.s32 %s272, 1
    %p276 = scmp.eq.s32.totalorder %s23, 3
    %p277 = scmp.ne.s32.totalorder %s272, %s274
    %p278 = scmp.eq.s32.totalorder %s23, 0
    %p279 = por %p277, %p278
    %p280 = scmp.ne.s32.totalorder %s272, %s274
    %p281 = scmp.eq.s32.totalorder %s28, 3
    %p282 = por %p280, %p281
    %p283 = scmp.ne.s32.totalorder %s274, %s275
    %p284 = scmp.eq.s32.totalorder %s28, 0
    %p285 = por %p283, %p284
    %p286 = scmp.ne.s32.totalorder %s274, %s275
    %p287 = scmp.eq.s32.totalorder %s29, 3
    %p288 = por %p286, %p287
    %p290 = scmp.ne.s32.totalorder %s275, %s289
    %p291 = scmp.eq.s32.totalorder %s29, 0
    %p292 = por %p290, %p291
    %s294 = sadd.s32 %s293, 1
    %p297 = scmp.eq.s32.totalorder %s23, 3
    %p298 = scmp.ne.s32.totalorder %s293, %s295
    %p299 = scmp.eq.s32.totalorder %s23, 0
    %p300 = por %p298, %p299
    %p301 = scmp.ne.s32.totalorder %s293, %s295
    %p302 = scmp.eq.s32.totalorder %s28, 3
    %p303 = por %p301, %p302
    %p304 = scmp.ne.s32.totalorder %s295, %s296
    %p305 = scmp.eq.s32.totalorder %s28, 0
    %p306 = por %p304, %p305
    %p307 = scmp.ne.s32.totalorder %s295, %s296
    %p308 = scmp.eq.s32.totalorder %s29, 3
    %p309 = por %p307, %p308
    %p311 = scmp.ne.s32.totalorder %s296, %s310
    %p312 = scmp.eq.s32.totalorder %s29, 0
    %p313 = por %p311, %p312
    %s315 = sadd.s32 %s314, 1
    %p318 = scmp.eq.s32.totalorder %s23, 3
    %p319 = scmp.ne.s32.totalorder %s314, %s316
    %p320 = scmp.eq.s32.totalorder %s23, 0
    %p321 = por %p319, %p320
    %p322 = scmp.ne.s32.totalorder %s314, %s316
    %p323 = scmp.eq.s32.totalorder %s28, 3
    %p324 = por %p322, %p323
    %p325 = scmp.ne.s32.totalorder %s316, %s317
    %p326 = scmp.eq.s32.totalorder %s28, 0
    %p327 = por %p325, %p326
    %p328 = scmp.ne.s32.totalorder %s316, %s317
    %p329 = scmp.eq.s32.totalorder %s29, 3
    %p330 = por %p328, %p329
    %p332 = scmp.ne.s32.totalorder %s317, %s331
    %p333 = scmp.eq.s32.totalorder %s29, 0
    %p334 = por %p332, %p333
    %s336 = sadd.s32 %s335, 1
    %p339 = scmp.eq.s32.totalorder %s23, 3
    %p340 = scmp.ne.s32.totalorder %s335, %s337
    %p341 = scmp.eq.s32.totalorder %s23, 0
    %p342 = por %p340, %p341
    %p343 = scmp.ne.s32.totalorder %s335, %s337
    %p344 = scmp.eq.s32.totalorder %s28, 3
    %p345 = por %p343, %p344
    %p346 = scmp.ne.s32.totalorder %s337, %s338
    %p347 = scmp.eq.s32.totalorder %s28, 0
    %p348 = por %p346, %p347
    %p349 = scmp.ne.s32.totalorder %s337, %s338
    %p350 = scmp.eq.s32.totalorder %s29, 3
    %p351 = por %p349, %p350
    %p353 = scmp.ne.s32.totalorder %s338, %s352
    %p354 = scmp.eq.s32.totalorder %s29, 0
    %p355 = por %p353, %p354
    %s357 = sadd.s32 %s356, 1
    %p360 = scmp.eq.s32.totalorder %s23, 3
    %p361 = scmp.ne.s32.totalorder %s356, %s358
    %p362 = scmp.eq.s32.totalorder %s23, 0
    %p363 = por %p361, %p362
    %p364 = scmp.ne.s32.totalorder %s356, %s358
    %p365 = scmp.eq.s32.totalorder %s28, 3
    %p366 = por %p364, %p365
    %p367 = scmp.ne.s32.totalorder %s358, %s359
    %p368 = scmp.eq.s32.totalorder %s28, 0
    %p369 = por %p367, %p368
    %p370 = scmp.ne.s32.totalorder %s358, %s359
    %p371 = scmp.eq.s32.totalorder %s29, 3
    %p372 = por %p370, %p371
    %p374 = scmp.ne.s32.totalorder %s359, %s373
    %p375 = scmp.eq.s32.totalorder %s29, 0
    %p376 = por %p374, %p375
    %s378 = sadd.s32 %s377, 1
    %p381 = scmp.eq.s32.totalorder %s23, 3
    %p382 = scmp.ne.s32.totalorder %s377, %s379
    %p383 = scmp.eq.s32.totalorder %s23, 0
    %p384 = por %p382, %p383
    %p385 = scmp.ne.s32.totalorder %s377, %s379
    %p386 = scmp.eq.s32.totalorder %s28, 3
    %p387 = por %p385, %p386
    %p388 = scmp.ne.s32.totalorder %s379, %s380
    %p389 = scmp.eq.s32.totalorder %s28, 0
    %p390 = por %p388, %p389
    %p391 = scmp.ne.s32.totalorder %s379, %s380
    %p392 = scmp.eq.s32.totalorder %s29, 3
    %p393 = por %p391, %p392
    %p395 = scmp.ne.s32.totalorder %s380, %s394
    %p396 = scmp.eq.s32.totalorder %s29, 0
    %p397 = por %p395, %p396
    %s398 = ssub.s32 %s23, %s30
    %p399 = scmp.eq.s32.totalorder %s398, 0
    %s401 = sadd.s32 %s400, 1
    %s402 = scalar_select %p399, %s400, %s401
    %p405 = pneg %p399
    %p406 = scmp.eq.s32.totalorder %s23, 3
    %p407 = por %p405, %p406
    %p408 = scmp.ne.s32.totalorder %s400, %s403
    %p409 = scmp.eq.s32.totalorder %s23, 0
    %p410 = por %p408, %p409
    %p411 = scmp.ne.s32.totalorder %s400, %s403
    %p412 = scmp.eq.s32.totalorder %s28, 3
    %p413 = por %p411, %p412
    %p414 = scmp.ne.s32.totalorder %s403, %s404
    %p415 = scmp.eq.s32.totalorder %s28, 0
    %p416 = por %p414, %p415
    %p417 = scmp.ne.s32.totalorder %s403, %s404
    %p418 = scmp.eq.s32.totalorder %s29, 3
    %p419 = por %p417, %p418
    %p421 = scmp.ne.s32.totalorder %s404, %s420
    %p422 = scmp.eq.s32.totalorder %s29, 0
    %p423 = por %p421, %p422
    %p424 = scmp.le.s32.totalorder 1, %s23
    %p425 = scmp.lt.s32.totalorder %s23, 5
    %p426 = pnand %p424, %p425
    %p427 = pneg %p426
    // Predicated region
    $region9: #{dlrm_forward.1} parent=5 // pred_check
      _
    $region10: #{dlrm_forward.1} parent=5 // pred_check_branch
      %429 = sbr.rel (%p426) target = $region12
    $region11: #{dlrm_forward.1} parent=5 // pred_region
      %s430 = ssub.s32 %s23, 1
      // Predicated region
      $region13: #{dlrm_forward.1} parent=11 // pred_check
        %p431 = pneg %p96
      $region14: #{dlrm_forward.1} parent=11 // pred_check_branch
        %433 = sbr.rel (%p431) target = $region16
      $region15: #{dlrm_forward.1} parent=11 // pred_region
        _
      $region16: #{dlrm_forward.1} parent=11 // pred_fallthru
        _
      // Predicated region
      $region17: #{dlrm_forward.1} parent=11 // pred_check
        %p434 = pneg %p117
      $region18: #{dlrm_forward.1} parent=11 // pred_check_branch
        %436 = sbr.rel (%p434) target = $region20
      $region19: #{dlrm_forward.1} parent=11 // pred_region
        _
      $region20: #{dlrm_forward.1} parent=11 // pred_fallthru
        _
      // Predicated region
      $region21: #{dlrm_forward.1} parent=11 // pred_check
        %p437 = pneg %p138
      $region22: #{dlrm_forward.1} parent=11 // pred_check_branch
        %439 = sbr.rel (%p437) target = $region24
      $region23: #{dlrm_forward.1} parent=11 // pred_region
        _
      $region24: #{dlrm_forward.1} parent=11 // pred_fallthru
        _
      // Predicated region
      $region25: #{dlrm_forward.1} parent=11 // pred_check
        %p440 = pneg %p159
      $region26: #{dlrm_forward.1} parent=11 // pred_check_branch
        %442 = sbr.rel (%p440) target = $region28
      $region27: #{dlrm_forward.1} parent=11 // pred_region
        _
      $region28: #{dlrm_forward.1} parent=11 // pred_fallthru
        _
      // Predicated region
      $region29: #{dlrm_forward.1} parent=11 // pred_check
        %p443 = pneg %p180
      $region30: #{dlrm_forward.1} parent=11 // pred_check_branch
        %445 = sbr.rel (%p443) target = $region32
      $region31: #{dlrm_forward.1} parent=11 // pred_region
        _
      $region32: #{dlrm_forward.1} parent=11 // pred_fallthru
        _
      // Predicated region
      $region33: #{dlrm_forward.1} parent=11 // pred_check
        %p446 = pneg %p201
      $region34: #{dlrm_forward.1} parent=11 // pred_check_branch
        %448 = sbr.rel (%p446) target = $region36
      $region35: #{dlrm_forward.1} parent=11 // pred_region
        _
      $region36: #{dlrm_forward.1} parent=11 // pred_fallthru
        _
      // Predicated region
      $region37: #{dlrm_forward.1} parent=11 // pred_check
        %p449 = pneg %p222
      $region38: #{dlrm_forward.1} parent=11 // pred_check_branch
        %451 = sbr.rel (%p449) target = $region40
      $region39: #{dlrm_forward.1} parent=11 // pred_region
        _
      $region40: #{dlrm_forward.1} parent=11 // pred_fallthru
        _
      // Predicated region
      $region41: #{dlrm_forward.1} parent=11 // pred_check
        %p452 = pneg %p243
      $region42: #{dlrm_forward.1} parent=11 // pred_check_branch
        %454 = sbr.rel (%p452) target = $region44
      $region43: #{dlrm_forward.1} parent=11 // pred_region
        _
      $region44: #{dlrm_forward.1} parent=11 // pred_fallthru
        _
      // Predicated region
      $region45: #{dlrm_forward.1} parent=11 // pred_check
        %p455 = pneg %p264
      $region46: #{dlrm_forward.1} parent=11 // pred_check_branch
        %457 = sbr.rel (%p455) target = $region48
      $region47: #{dlrm_forward.1} parent=11 // pred_region
        _
      $region48: #{dlrm_forward.1} parent=11 // pred_fallthru
        _
      // Predicated region
      $region49: #{dlrm_forward.1} parent=11 // pred_check
        %p458 = pneg %p285
      $region50: #{dlrm_forward.1} parent=11 // pred_check_branch
        %460 = sbr.rel (%p458) target = $region52
      $region51: #{dlrm_forward.1} parent=11 // pred_region
        _
      $region52: #{dlrm_forward.1} parent=11 // pred_fallthru
        _
      // Predicated region
      $region53: #{dlrm_forward.1} parent=11 // pred_check
        %p461 = pneg %p306
      $region54: #{dlrm_forward.1} parent=11 // pred_check_branch
        %463 = sbr.rel (%p461) target = $region56
      $region55: #{dlrm_forward.1} parent=11 // pred_region
        _
      $region56: #{dlrm_forward.1} parent=11 // pred_fallthru
        _
      // Predicated region
      $region57: #{dlrm_forward.1} parent=11 // pred_check
        %p464 = pneg %p327
      $region58: #{dlrm_forward.1} parent=11 // pred_check_branch
        %466 = sbr.rel (%p464) target = $region60
      $region59: #{dlrm_forward.1} parent=11 // pred_region
        _
      $region60: #{dlrm_forward.1} parent=11 // pred_fallthru
        _
      // Predicated region
      $region61: #{dlrm_forward.1} parent=11 // pred_check
        %p467 = pneg %p348
      $region62: #{dlrm_forward.1} parent=11 // pred_check_branch
        %469 = sbr.rel (%p467) target = $region64
      $region63: #{dlrm_forward.1} parent=11 // pred_region
        _
      $region64: #{dlrm_forward.1} parent=11 // pred_fallthru
        _
      // Predicated region
      $region65: #{dlrm_forward.1} parent=11 // pred_check
        %p470 = pneg %p369
      $region66: #{dlrm_forward.1} parent=11 // pred_check_branch
        %472 = sbr.rel (%p470) target = $region68
      $region67: #{dlrm_forward.1} parent=11 // pred_region
        _
      $region68: #{dlrm_forward.1} parent=11 // pred_fallthru
        _
      // Predicated region
      $region69: #{dlrm_forward.1} parent=11 // pred_check
        %p473 = pneg %p390
      $region70: #{dlrm_forward.1} parent=11 // pred_check_branch
        %475 = sbr.rel (%p473) target = $region72
      $region71: #{dlrm_forward.1} parent=11 // pred_region
        _
      $region72: #{dlrm_forward.1} parent=11 // pred_fallthru
        _
    $region12: #{dlrm_forward.1} parent=5 // pred_fallthru
      _
    %p476 = scmp.lt.s32.totalorder %s23, 4
    // Predicated region
    $region73: #{dlrm_forward.1} parent=5 // pred_check
      %p477 = pneg %p476
    $region74: #{dlrm_forward.1} parent=5 // pred_check_branch
      %479 = sbr.rel (%p477) target = $region76
    $region75: #{dlrm_forward.1} parent=5 // pred_region
      // Predicated region
      $region77: #{dlrm_forward.1} parent=75 // pred_check
        %p480 = pneg %p43
      $region78: #{dlrm_forward.1} parent=75 // pred_check_branch
        %482 = sbr.rel (%p480) target = $region80
      $region79: #{dlrm_forward.1} parent=75 // pred_region
        %p483 = scmp.lt.s32.totalorder %s23, 3
        %s484 = scalar_select %p483, %s23, 3
        %s485 = smul.addr %s484, 8
        %s486 = scalar_lea.vmem %s0, %s485
      $region80: #{dlrm_forward.1} parent=75 // pred_fallthru
        _
      // Predicated region
      $region81: #{dlrm_forward.1} parent=75 // pred_check
        %p487 = pneg %p69
      $region82: #{dlrm_forward.1} parent=75 // pred_check_branch
        %489 = sbr.rel (%p487) target = $region84
      $region83: #{dlrm_forward.1} parent=75 // pred_region
        %p490 = scmp.lt.s32.totalorder %s23, 3
        %s491 = scalar_select %p490, %s23, 3
        %s492 = smul.addr %s491, 8
        %s493 = scalar_lea.vmem %s1, %s492
      $region84: #{dlrm_forward.1} parent=75 // pred_fallthru
        _
    $region76: #{dlrm_forward.1} parent=5 // pred_fallthru
      _
    %p494 = scmp.le.s32.totalorder 1, %s23
    %p495 = scmp.lt.s32.totalorder %s23, 5
    %p496 = pnand %p494, %p495
    %p497 = pneg %p496
    // Predicated region
    $region85: #{dlrm_forward.1} parent=5 // pred_check
      _
    $region86: #{dlrm_forward.1} parent=5 // pred_check_branch
      %499 = sbr.rel (%p496) target = $region88
    $region87: #{dlrm_forward.1} parent=5 // pred_region
      %s500 = ssub.s32 %s23, 1
      %p501 = scmp.lt.s32.totalorder %s28, 3
      %s502 = scalar_select %p501, %s28, 3
      %s503 = smul.addr %s502, 8
      %s504 = scalar_lea.vmem %s0, %s503
      %p505 = pneg %p49
      %p506 = pneg %p46
      %p507 = scmp.lt.s32.totalorder %s28, 3
      %s508 = scalar_select %p507, %s28, 3
      %s509 = smul.addr %s508, 8
      %s510 = scalar_lea.vmem %s1, %s509
      %p511 = pneg %p75
      %p512 = pneg %p72
      %p513 = pneg %p96
      %p514 = pneg %p93
      %p515 = pneg %p117
      %p516 = pneg %p114
      %p517 = pneg %p138
      %p518 = pneg %p135
      %p519 = pneg %p159
      %p520 = pneg %p156
      %p521 = pneg %p180
      %p522 = pneg %p177
      %p523 = pneg %p201
      %p524 = pneg %p198
      %p525 = pneg %p222
      %p526 = pneg %p219
      %p527 = pneg %p243
      %p528 = pneg %p240
      %p529 = pneg %p264
      %p530 = pneg %p261
      %p531 = pneg %p285
      %p532 = pneg %p282
      %p533 = pneg %p306
      %p534 = pneg %p303
      %p535 = pneg %p327
      %p536 = pneg %p324
      %p537 = pneg %p348
      %p538 = pneg %p345
      %p539 = pneg %p369
      %p540 = pneg %p366
      %p541 = pneg %p390
      %p542 = pneg %p387
      %p543 = pneg %p416
      %p544 = pneg %p413
      %p545 = scmp.lt.s32.totalorder %s28, 3
      %s546 = scalar_select %p545, %s28, 3
      %s547 = smul.addr %s546, 8
      %s548 = scalar_lea.vmem %s17, %s547
      %p549 = scmp.lt.s32.totalorder %s28, 3
      %s550 = scalar_select %p549, %s28, 3
      %s551 = smul.addr %s550, 8
      %s552 = scalar_lea.vmem %s0, %s551
      %p553 = scmp.lt.s32.totalorder %s28, 3
      %s554 = scalar_select %p553, %s28, 3
      %s555 = smul.addr %s554, 8
      %s556 = scalar_lea.vmem %s1, %s555
      %p557 = scmp.lt.s32.totalorder %s28, 3
      %s558 = scalar_select %p557, %s28, 3
      %s559 = smul.addr %s558, 8
      %s560 = scalar_lea.vmem %s17, %s559
      %v561 = vld [vmem:[%s552] sm:$0xff]
      %v562 = vld [vmem:[%s556] sm:$0xff]
      %v563 = vld [vmem:[%s2] sm:$0xff]
      %v564 = vld [vmem:[%s2 + $0x8] sm:$0xff]
      %v565 = vld [vmem:[%s3] sm:$0x1]
      %v567 = vlaneseq
      %v568 = vshrl.u32 %v567, 7
      %v569 = vsub.s32 0, %v568
      %v570 = vrot.slane %v565, %v569
      %vm572 = vcmask 130048
      %v574 = vsel %vm572, %v561, 0
      %576 = vmatprep.subr.mxu0 0.0
      %577 = vmatpush1.msra.mxu0 0.0
      %578 = vmatprep.subr.mxu0 0.0
      %579 = vmatpush1.msra.mxu0 0.0
      %580 = vmatprep.subr.mxu0 0.0
      %581 = vmatpush1.msra.mxu0 0.0
      %582 = vmatprep.subr.mxu0 0.0
      %583 = vmatpush1.msra.mxu0 0.0
      %584 = vmatprep.subr.mxu0 0.0
      %585 = vmatpush1.msra.mxu0 0.0
      %586 = vmatprep.subr.mxu0 0.0
      %587 = vmatpush1.msra.mxu0 0.0
      %588 = vmatprep.subr.mxu0 0.0
      %589 = vmatpush1.msra.mxu0 0.0
      %590 = vmatprep.subr.mxu0 0.0
      %591 = vmatpush1.msra.mxu0 0.0
      %592 = vmatprep.subr.mxu0 0.0
      %593 = vmatpush1.msra.mxu0 0.0
      %594 = vmatprep.subr.mxu0 0.0
      %595 = vmatpush1.msra.mxu0 0.0
      %596 = vmatprep.subr.mxu0 0.0
      %597 = vmatpush1.msra.mxu0 0.0
      %598 = vmatprep.subr.mxu0 0.0
      %599 = vmatpush1.msra.mxu0 0.0
      %600 = vmatprep.subr.mxu0 0.0
      %601 = vmatpush1.msra.mxu0 0.0
      %602 = vmatprep.subr.mxu0 0.0
      %603 = vmatpush1.msra.mxu0 0.0
      %604 = vmatprep.subr.mxu0 0.0
      %605 = vmatpush1.msra.mxu0 %v564
      %606 = vmatprep.subr.mxu0 0.0
      %607 = vmatpush1.msra.mxu0 %v563
      %608 = vmatprep.subr.mxu0 0.0
      %609 = vmatpush2.msra.mxu0 0.0
      %610 = vmatprep.subr.mxu0 0.0
      %611 = vmatpush2.msra.mxu0 0.0
      %612 = vmatprep.subr.mxu0 0.0
      %613 = vmatpush2.msra.mxu0 0.0
      %614 = vmatprep.subr.mxu0 0.0
      %615 = vmatpush2.msra.mxu0 0.0
      %616 = vmatprep.subr.mxu0 0.0
      %617 = vmatpush2.msra.mxu0 0.0
      %618 = vmatprep.subr.mxu0 0.0
      %619 = vmatpush2.msra.mxu0 0.0
      %620 = vmatprep.subr.mxu0 0.0
      %621 = vmatpush2.msra.mxu0 0.0
      %622 = vmatprep.subr.mxu0 0.0
      %623 = vmatpush2.msra.mxu0 0.0
      %624 = vmatprep.subr.mxu0 0.0
      %625 = vmatpush2.msra.mxu0 0.0
      %626 = vmatprep.subr.mxu0 0.0
      %627 = vmatpush2.msra.mxu0 0.0
      %628 = vmatprep.subr.mxu0 0.0
      %629 = vmatpush2.msra.mxu0 0.0
      %630 = vmatprep.subr.mxu0 0.0
      %631 = vmatpush2.msra.mxu0 0.0
      %632 = vmatprep.subr.mxu0 0.0
      %633 = vmatpush2.msra.mxu0 0.0
      %634 = vmatprep.subr.mxu0 0.0
      %635 = vmatpush2.msra.mxu0 0.0
      %636 = vmatprep.subr.mxu0 0.0
      %637 = vmatpush2.msra.mxu0 0.0
      %638 = vmatprep.subr.mxu0 0.0
      %639 = vmatpush2.msra.mxu0 0.0
      %640 = vmatprep.mubr.f32.mxu0 0.0
      %641 = vmatmul.mubr.f32.gmra.mxu0 %v574
      %v642 = vpop.f32.mrf.mxu0
      %v643 = vadd.f32 %v570, %v642
      %v644 = vpop.f32.mrf.mxu0
      %645 = vdwg.mxu0
      %v646 = vmax.f32 %v643, 0.0
      %v647 = vld [vmem:[%s4] sm:$0xff]
      %v648 = vld [vmem:[%s4 + $0x8] sm:$0xff]
      %v649 = vld [vmem:[%s4 + $0x10] sm:$0xff]
      %v650 = vld [vmem:[%s4 + $0x18] sm:$0xff]
      %v651 = vld [vmem:[%s5] sm:$0x1]
      %v653 = vlaneseq
      %v654 = vshrl.u32 %v653, 7
      %v655 = vsub.s32 0, %v654
      %v656 = vrot.slane %v651, %v655
      %vm658 = vcmask 261120
      %v660 = vsel %vm658, %v646, 0
      %662 = vmatprep.subr.mxu0 0.0
      %663 = vmatpush1.msra.mxu0 0.0
      %664 = vmatprep.subr.mxu0 0.0
      %665 = vmatpush1.msra.mxu0 0.0
      %666 = vmatprep.subr.mxu0 0.0
      %667 = vmatpush1.msra.mxu0 0.0
      %668 = vmatprep.subr.mxu0 0.0
      %669 = vmatpush1.msra.mxu0 0.0
      %670 = vmatprep.subr.mxu0 0.0
      %671 = vmatpush1.msra.mxu0 0.0
      %672 = vmatprep.subr.mxu0 0.0
      %673 = vmatpush1.msra.mxu0 0.0
      %674 = vmatprep.subr.mxu0 0.0
      %675 = vmatpush1.msra.mxu0 0.0
      %676 = vmatprep.subr.mxu0 0.0
      %677 = vmatpush1.msra.mxu0 0.0
      %678 = vmatprep.subr.mxu0 0.0
      %679 = vmatpush1.msra.mxu0 0.0
      %680 = vmatprep.subr.mxu0 0.0
      %681 = vmatpush1.msra.mxu0 0.0
      %682 = vmatprep.subr.mxu0 0.0
      %683 = vmatpush1.msra.mxu0 0.0
      %684 = vmatprep.subr.mxu0 0.0
      %685 = vmatpush1.msra.mxu0 0.0
      %686 = vmatprep.subr.mxu0 0.0
      %687 = vmatpush1.msra.mxu0 %v650
      %688 = vmatprep.subr.mxu0 0.0
      %689 = vmatpush1.msra.mxu0 %v649
      %690 = vmatprep.subr.mxu0 0.0
      %691 = vmatpush1.msra.mxu0 %v648
      %692 = vmatprep.subr.mxu0 0.0
      %693 = vmatpush1.msra.mxu0 %v647
      %694 = vmatprep.subr.mxu0 0.0
      %695 = vmatpush2.msra.mxu0 0.0
      %696 = vmatprep.subr.mxu0 0.0
      %697 = vmatpush2.msra.mxu0 0.0
      %698 = vmatprep.subr.mxu0 0.0
      %699 = vmatpush2.msra.mxu0 0.0
      %700 = vmatprep.subr.mxu0 0.0
      %701 = vmatpush2.msra.mxu0 0.0
      %702 = vmatprep.subr.mxu0 0.0
      %703 = vmatpush2.msra.mxu0 0.0
      %704 = vmatprep.subr.mxu0 0.0
      %705 = vmatpush2.msra.mxu0 0.0
      %706 = vmatprep.subr.mxu0 0.0
      %707 = vmatpush2.msra.mxu0 0.0
      %708 = vmatprep.subr.mxu0 0.0
      %709 = vmatpush2.msra.mxu0 0.0
      %710 = vmatprep.subr.mxu0 0.0
      %711 = vmatpush2.msra.mxu0 0.0
      %712 = vmatprep.subr.mxu0 0.0
      %713 = vmatpush2.msra.mxu0 0.0
      %714 = vmatprep.subr.mxu0 0.0
      %715 = vmatpush2.msra.mxu0 0.0
      %716 = vmatprep.subr.mxu0 0.0
      %717 = vmatpush2.msra.mxu0 0.0
      %718 = vmatprep.subr.mxu0 0.0
      %719 = vmatpush2.msra.mxu0 0.0
      %720 = vmatprep.subr.mxu0 0.0
      %721 = vmatpush2.msra.mxu0 0.0
      %722 = vmatprep.subr.mxu0 0.0
      %723 = vmatpush2.msra.mxu0 0.0
      %724 = vmatprep.subr.mxu0 0.0
      %725 = vmatpush2.msra.mxu0 0.0
      %726 = vmatprep.mubr.f32.mxu0 0.0
      %727 = vmatmul.mubr.f32.gmra.mxu0 %v660
      %v728 = vpop.f32.mrf.mxu0
      %v729 = vadd.f32 %v656, %v728
      %v730 = vpop.f32.mrf.mxu0
      %731 = vdwg.mxu0
      %v732 = vmax.f32 %v729, 0.0
      %v733 = vld [vmem:[%s6] sm:$0xff]
      %v734 = vld [vmem:[%s6 + $0x8] sm:$0xff]
      %v735 = vld [vmem:[%s6 + $0x10] sm:$0xff]
      %v736 = vld [vmem:[%s6 + $0x18] sm:$0xff]
      %v737 = vld [vmem:[%s6 + $0x20] sm:$0xff]
      %v738 = vld [vmem:[%s6 + $0x28] sm:$0xff]
      %v739 = vld [vmem:[%s6 + $0x30] sm:$0xff]
      %v740 = vld [vmem:[%s6 + $0x38] sm:$0xff]
      %v741 = vld [vmem:[%s6 + $0x40] sm:$0xff]
      %v742 = vld [vmem:[%s6 + $0x48] sm:$0xff]
      %v743 = vld [vmem:[%s7] sm:$0xff]
      %v744 = vld [vmem:[%s7 + $0x8] sm:$0xff]
      %v745 = vld [vmem:[%s7 + $0x10] sm:$0xff]
      %v746 = vld [vmem:[%s7 + $0x18] sm:$0xff]
      %v747 = vld [vmem:[%s7 + $0x20] sm:$0xff]
      %v748 = vld [vmem:[%s7 + $0x28] sm:$0xff]
      %v749 = vld [vmem:[%s7 + $0x30] sm:$0xff]
      %v750 = vld [vmem:[%s7 + $0x38] sm:$0xff]
      %v751 = vld [vmem:[%s7 + $0x40] sm:$0xff]
      %v752 = vld [vmem:[%s7 + $0x48] sm:$0xff]
      %v753 = vld [vmem:[%s8] sm:$0xff]
      %v754 = vld [vmem:[%s8 + $0x8] sm:$0xff]
      %v755 = vld [vmem:[%s8 + $0x10] sm:$0xff]
      %v756 = vld [vmem:[%s8 + $0x18] sm:$0xff]
      %v757 = vld [vmem:[%s8 + $0x20] sm:$0xff]
      %v758 = vld [vmem:[%s8 + $0x28] sm:$0xff]
      %v759 = vld [vmem:[%s8 + $0x30] sm:$0xff]
      %v760 = vld [vmem:[%s8 + $0x38] sm:$0xff]
      %v761 = vld [vmem:[%s8 + $0x40] sm:$0xff]
      %v762 = vld [vmem:[%s8 + $0x48] sm:$0xff]
      %v763 = vld [vmem:[%s9] sm:$0xff]
      %v764 = vld [vmem:[%s9 + $0x8] sm:$0xff]
      %v765 = vld [vmem:[%s9 + $0x10] sm:$0xff]
      %v766 = vld [vmem:[%s9 + $0x18] sm:$0xff]
      %v767 = vld [vmem:[%s9 + $0x20] sm:$0xff]
      %v768 = vld [vmem:[%s9 + $0x28] sm:$0xff]
      %v769 = vld [vmem:[%s9 + $0x30] sm:$0xff]
      %v770 = vld [vmem:[%s9 + $0x38] sm:$0xff]
      %v771 = vld [vmem:[%s9 + $0x40] sm:$0xff]
      %v772 = vld [vmem:[%s9 + $0x48] sm:$0xff]
      %v773 = vld [vmem:[%s10] sm:$0xff]
      %v774 = vld [vmem:[%s10 + $0x8] sm:$0xff]
      %v775 = vld [vmem:[%s11] sm:$0xff]
      %v776 = vld [vmem:[%s11 + $0x8] sm:$0xff]
      %v777 = vld [vmem:[%s11 + $0x10] sm:$0xff]
      %v778 = vld [vmem:[%s11 + $0x18] sm:$0xff]
      %v779 = vld [vmem:[%s11 + $0x20] sm:$0xff]
      %v780 = vld [vmem:[%s11 + $0x28] sm:$0xff]
      %v781 = vld [vmem:[%s11 + $0x30] sm:$0xff]
      %v782 = vld [vmem:[%s11 + $0x38] sm:$0xff]
      %v783 = vld [vmem:[%s11 + $0x40] sm:$0xff]
      %v784 = vld [vmem:[%s11 + $0x48] sm:$0xff]
      %v785 = vld [vmem:[%s11 + $0x50] sm:$0xff]
      %v786 = vld [vmem:[%s11 + $0x58] sm:$0xff]
      %v787 = vld [vmem:[%s11 + $0x60] sm:$0xff]
      %v788 = vld [vmem:[%s11 + $0x68] sm:$0xff]
      %v789 = vld [vmem:[%s11 + $0x70] sm:$0xff]
      %v790 = vld [vmem:[%s11 + $0x78] sm:$0xff]
      %v791 = vld [vmem:[%s11 + $0x80] sm:$0xff]
      %v792 = vld [vmem:[%s11 + $0x88] sm:$0xff]
      %v793 = vld [vmem:[%s11 + $0x90] sm:$0xff]
      %v794 = vld [vmem:[%s11 + $0x98] sm:$0xff]
      %v795 = vld [vmem:[%s11 + $0xa0] sm:$0xff]
      %v796 = vld [vmem:[%s11 + $0xa8] sm:$0xff]
      %v797 = vld [vmem:[%s11 + $0xb0] sm:$0xff]
      %v798 = vld [vmem:[%s11 + $0xb8] sm:$0xff]
      %v799 = vld [vmem:[%s11 + $0xc0] sm:$0xff]
      %v800 = vld [vmem:[%s11 + $0xc8] sm:$0xff]
      %v801 = vld [vmem:[%s11 + $0xd0] sm:$0xff]
      %v802 = vld [vmem:[%s11 + $0xd8] sm:$0xff]
      %v803 = vld [vmem:[%s11 + $0xe0] sm:$0xff]
      %v804 = vld [vmem:[%s11 + $0xe8] sm:$0xff]
      %v805 = vld [vmem:[%s11 + $0xf0] sm:$0xff]
      %v806 = vld [vmem:[%s11 + $0xf8] sm:$0xff]
      %v807 = vld [vmem:[%s11 + $0x100] sm:$0xff]
      %v808 = vld [vmem:[%s11 + $0x108] sm:$0xff]
      %v809 = vld [vmem:[%s11 + $0x110] sm:$0xff]
      %v810 = vld [vmem:[%s11 + $0x118] sm:$0xff]
      %v811 = vld [vmem:[%s11 + $0x120] sm:$0xff]
      %v812 = vld [vmem:[%s11 + $0x128] sm:$0xff]
      %v813 = vld [vmem:[%s11 + $0x130] sm:$0xff]
      %v814 = vld [vmem:[%s11 + $0x138] sm:$0xff]
      %v815 = vld [vmem:[%s11 + $0x140] sm:$0xff]
      %v816 = vld [vmem:[%s11 + $0x148] sm:$0xff]
      %v817 = vld [vmem:[%s11 + $0x150] sm:$0xff]
      %v818 = vld [vmem:[%s11 + $0x158] sm:$0xff]
      %v819 = vld [vmem:[%s11 + $0x160] sm:$0xff]
      %v820 = vld [vmem:[%s11 + $0x168] sm:$0xff]
      %v821 = vld [vmem:[%s11 + $0x170] sm:$0xff]
      %v822 = vld [vmem:[%s11 + $0x178] sm:$0xff]
      %v823 = vld [vmem:[%s11 + $0x180] sm:$0xff]
      %v824 = vld [vmem:[%s11 + $0x188] sm:$0xff]
      %v825 = vld [vmem:[%s11 + $0x190] sm:$0xff]
      %v826 = vld [vmem:[%s11 + $0x198] sm:$0xff]
      %v827 = vld [vmem:[%s11 + $0x1a0] sm:$0xff]
      %v828 = vld [vmem:[%s11 + $0x1a8] sm:$0xff]
      %v829 = vld [vmem:[%s11 + $0x1b0] sm:$0xff]
      %v830 = vld [vmem:[%s11 + $0x1b8] sm:$0xff]
      %v831 = vld [vmem:[%s11 + $0x1c0] sm:$0xff]
      %v832 = vld [vmem:[%s11 + $0x1c8] sm:$0xff]
      %v833 = vld [vmem:[%s11 + $0x1d0] sm:$0xff]
      %v834 = vld [vmem:[%s11 + $0x1d8] sm:$0xff]
      %v835 = vld [vmem:[%s11 + $0x1e0] sm:$0xff]
      %v836 = vld [vmem:[%s11 + $0x1e8] sm:$0xff]
      %v837 = vld [vmem:[%s11 + $0x1f0] sm:$0xff]
      %v838 = vld [vmem:[%s11 + $0x1f8] sm:$0xff]
      %v839 = vld [vmem:[%s11 + $0x200] sm:$0xff]
      %v840 = vld [vmem:[%s11 + $0x208] sm:$0xff]
      %v841 = vld [vmem:[%s12] sm:$0x1]
      %v843 = vsel %vm572, %v562, 0
      %845 = vmatprep.subr.mxu0 0.0
      %846 = vmatpush1.msra.mxu0 0.0
      %847 = vmatprep.subr.mxu0 0.0
      %848 = vmatpush1.msra.mxu0 0.0
      %849 = vmatprep.subr.mxu0 0.0
      %850 = vmatpush1.msra.mxu0 0.0
      %851 = vmatprep.subr.mxu0 0.0
      %852 = vmatpush1.msra.mxu0 0.0
      %853 = vmatprep.subr.mxu0 0.0
      %854 = vmatpush1.msra.mxu0 0.0
      %855 = vmatprep.subr.mxu0 0.0
      %856 = vmatpush1.msra.mxu0 0.0
      %857 = vmatprep.subr.mxu0 0.0
      %858 = vmatpush1.msra.mxu0 0.0
      %859 = vmatprep.subr.mxu0 0.0
      %860 = vmatpush1.msra.mxu0 0.0
      %861 = vmatprep.subr.mxu0 0.0
      %862 = vmatpush1.msra.mxu0 0.0
      %863 = vmatprep.subr.mxu0 0.0
      %864 = vmatpush1.msra.mxu0 0.0
      %865 = vmatprep.subr.mxu0 0.0
      %866 = vmatpush1.msra.mxu0 0.0
      %867 = vmatprep.subr.mxu0 0.0
      %868 = vmatpush1.msra.mxu0 0.0
      %869 = vmatprep.subr.mxu0 0.0
      %870 = vmatpush1.msra.mxu0 0.0
      %871 = vmatprep.subr.mxu0 0.0
      %872 = vmatpush1.msra.mxu0 0.0
      %873 = vmatprep.subr.mxu0 %v749
      %874 = vmatpush1.msra.mxu0 %v748
      %875 = vmatprep.subr.mxu0 %v744
      %876 = vmatpush1.msra.mxu0 %v743
      %877 = vmatprep.subr.mxu0 0.0
      %878 = vmatpush2.msra.mxu0 0.0
      %879 = vmatprep.subr.mxu0 0.0
      %880 = vmatpush2.msra.mxu0 0.0
      %881 = vmatprep.subr.mxu0 0.0
      %882 = vmatpush2.msra.mxu0 0.0
      %883 = vmatprep.subr.mxu0 0.0
      %884 = vmatpush2.msra.mxu0 0.0
      %885 = vmatprep.subr.mxu0 0.0
      %886 = vmatpush2.msra.mxu0 0.0
      %887 = vmatprep.subr.mxu0 0.0
      %888 = vmatpush2.msra.mxu0 0.0
      %889 = vmatprep.subr.mxu0 0.0
      %890 = vmatpush2.msra.mxu0 0.0
      %891 = vmatprep.subr.mxu0 0.0
      %892 = vmatpush2.msra.mxu0 0.0
      %893 = vmatprep.subr.mxu0 0.0
      %894 = vmatpush2.msra.mxu0 0.0
      %895 = vmatprep.subr.mxu0 0.0
      %896 = vmatpush2.msra.mxu0 0.0
      %897 = vmatprep.subr.mxu0 0.0
      %898 = vmatpush2.msra.mxu0 0.0
      %899 = vmatprep.subr.mxu0 0.0
      %900 = vmatpush2.msra.mxu0 0.0
      %901 = vmatprep.subr.mxu0 0.0
      %902 = vmatpush2.msra.mxu0 0.0
      %903 = vmatprep.subr.mxu0 0.0
      %904 = vmatpush2.msra.mxu0 0.0
      %905 = vmatprep.subr.mxu0 0.0
      %906 = vmatpush2.msra.mxu0 0.0
      %907 = vmatprep.subr.mxu0 0.0
      %908 = vmatpush2.msra.mxu0 0.0
      %909 = vmatprep.mubr.f32.mxu0 0.0
      %910 = vmatmul.mubr.f32.gmra.mxu0 %v843
      %v911 = vpop.f32.mrf.mxu0
      %v912 = vadd.f32 0.0, %v911
      %v913 = vpop.f32.mrf.mxu0
      %v914 = vadd.f32 0.0, %v913
      %915 = vdwg.mxu0
      %916 = vmatprep.subr.mxu0 0.0
      %917 = vmatpush1.msra.mxu0 0.0
      %918 = vmatprep.subr.mxu0 0.0
      %919 = vmatpush1.msra.mxu0 0.0
      %920 = vmatprep.subr.mxu0 0.0
      %921 = vmatpush1.msra.mxu0 0.0
      %922 = vmatprep.subr.mxu0 0.0
      %923 = vmatpush1.msra.mxu0 0.0
      %924 = vmatprep.subr.mxu0 0.0
      %925 = vmatpush1.msra.mxu0 0.0
      %926 = vmatprep.subr.mxu0 0.0
      %927 = vmatpush1.msra.mxu0 0.0
      %928 = vmatprep.subr.mxu0 0.0
      %929 = vmatpush1.msra.mxu0 0.0
      %930 = vmatprep.subr.mxu0 0.0
      %931 = vmatpush1.msra.mxu0 0.0
      %932 = vmatprep.subr.mxu0 0.0
      %933 = vmatpush1.msra.mxu0 0.0
      %934 = vmatprep.subr.mxu0 0.0
      %935 = vmatpush1.msra.mxu0 0.0
      %936 = vmatprep.subr.mxu0 0.0
      %937 = vmatpush1.msra.mxu0 0.0
      %938 = vmatprep.subr.mxu0 0.0
      %939 = vmatpush1.msra.mxu0 0.0
      %940 = vmatprep.subr.mxu0 0.0
      %941 = vmatpush1.msra.mxu0 0.0
      %942 = vmatprep.subr.mxu0 0.0
      %943 = vmatpush1.msra.mxu0 0.0
      %944 = vmatprep.subr.mxu0 %v751
      %945 = vmatpush1.msra.mxu0 %v750
      %946 = vmatprep.subr.mxu0 %v746
      %947 = vmatpush1.msra.mxu0 %v745
      %948 = vmatprep.subr.mxu0 0.0
      %949 = vmatpush2.msra.mxu0 0.0
      %950 = vmatprep.subr.mxu0 0.0
      %951 = vmatpush2.msra.mxu0 0.0
      %952 = vmatprep.subr.mxu0 0.0
      %953 = vmatpush2.msra.mxu0 0.0
      %954 = vmatprep.subr.mxu0 0.0
      %955 = vmatpush2.msra.mxu0 0.0
      %956 = vmatprep.subr.mxu0 0.0
      %957 = vmatpush2.msra.mxu0 0.0
      %958 = vmatprep.subr.mxu0 0.0
      %959 = vmatpush2.msra.mxu0 0.0
      %960 = vmatprep.subr.mxu0 0.0
      %961 = vmatpush2.msra.mxu0 0.0
      %962 = vmatprep.subr.mxu0 0.0
      %963 = vmatpush2.msra.mxu0 0.0
      %964 = vmatprep.subr.mxu0 0.0
      %965 = vmatpush2.msra.mxu0 0.0
      %966 = vmatprep.subr.mxu0 0.0
      %967 = vmatpush2.msra.mxu0 0.0
      %968 = vmatprep.subr.mxu0 0.0
      %969 = vmatpush2.msra.mxu0 0.0
      %970 = vmatprep.subr.mxu0 0.0
      %971 = vmatpush2.msra.mxu0 0.0
      %972 = vmatprep.subr.mxu0 0.0
      %973 = vmatpush2.msra.mxu0 0.0
      %974 = vmatprep.subr.mxu0 0.0
      %975 = vmatpush2.msra.mxu0 0.0
      %976 = vmatprep.subr.mxu0 0.0
      %977 = vmatpush2.msra.mxu0 0.0
      %978 = vmatprep.subr.mxu0 0.0
      %979 = vmatpush2.msra.mxu0 0.0
      %980 = vmatprep.mubr.f32.mxu0 0.0
      %981 = vmatmul.mubr.f32.gmra.mxu0 %v843
      %v982 = vpop.f32.mrf.mxu0
      %v983 = vadd.f32 0.0, %v982
      %v984 = vpop.f32.mrf.mxu0
      %v985 = vadd.f32 0.0, %v984
      %986 = vdwg.mxu0
      %987 = vmatprep.subr.mxu0 0.0
      %988 = vmatpush1.msra.mxu0 0.0
      %989 = vmatprep.subr.mxu0 0.0
      %990 = vmatpush1.msra.mxu0 0.0
      %991 = vmatprep.subr.mxu0 0.0
      %992 = vmatpush1.msra.mxu0 0.0
      %993 = vmatprep.subr.mxu0 0.0
      %994 = vmatpush1.msra.mxu0 0.0
      %995 = vmatprep.subr.mxu0 0.0
      %996 = vmatpush1.msra.mxu0 0.0
      %997 = vmatprep.subr.mxu0 0.0
      %998 = vmatpush1.msra.mxu0 0.0
      %999 = vmatprep.subr.mxu0 0.0
      %1000 = vmatpush1.msra.mxu0 0.0
      %1001 = vmatprep.subr.mxu0 0.0
      %1002 = vmatpush1.msra.mxu0 0.0
      %1003 = vmatprep.subr.mxu0 0.0
      %1004 = vmatpush1.msra.mxu0 0.0
      %1005 = vmatprep.subr.mxu0 0.0
      %1006 = vmatpush1.msra.mxu0 0.0
      %1007 = vmatprep.subr.mxu0 0.0
      %1008 = vmatpush1.msra.mxu0 0.0
      %1009 = vmatprep.subr.mxu0 0.0
      %1010 = vmatpush1.msra.mxu0 0.0
      %1011 = vmatprep.subr.mxu0 0.0
      %1012 = vmatpush1.msra.mxu0 0.0
      %1013 = vmatprep.subr.mxu0 0.0
      %1014 = vmatpush1.msra.mxu0 0.0
      %1015 = vmatprep.subr.mxu0 0.0
      %1016 = vmatpush1.msra.mxu0 %v752
      %1017 = vmatprep.subr.mxu0 0.0
      %1018 = vmatpush1.msra.mxu0 %v747
      %1019 = vmatprep.subr.mxu0 0.0
      %1020 = vmatpush2.msra.mxu0 0.0
      %1021 = vmatprep.subr.mxu0 0.0
      %1022 = vmatpush2.msra.mxu0 0.0
      %1023 = vmatprep.subr.mxu0 0.0
      %1024 = vmatpush2.msra.mxu0 0.0
      %1025 = vmatprep.subr.mxu0 0.0
      %1026 = vmatpush2.msra.mxu0 0.0
      %1027 = vmatprep.subr.mxu0 0.0
      %1028 = vmatpush2.msra.mxu0 0.0
      %1029 = vmatprep.subr.mxu0 0.0
      %1030 = vmatpush2.msra.mxu0 0.0
      %1031 = vmatprep.subr.mxu0 0.0
      %1032 = vmatpush2.msra.mxu0 0.0
      %1033 = vmatprep.subr.mxu0 0.0
      %1034 = vmatpush2.msra.mxu0 0.0
      %1035 = vmatprep.subr.mxu0 0.0
      %1036 = vmatpush2.msra.mxu0 0.0
      %1037 = vmatprep.subr.mxu0 0.0
      %1038 = vmatpush2.msra.mxu0 0.0
      %1039 = vmatprep.subr.mxu0 0.0
      %1040 = vmatpush2.msra.mxu0 0.0
      %1041 = vmatprep.subr.mxu0 0.0
      %1042 = vmatpush2.msra.mxu0 0.0
      %1043 = vmatprep.subr.mxu0 0.0
      %1044 = vmatpush2.msra.mxu0 0.0
      %1045 = vmatprep.subr.mxu0 0.0
      %1046 = vmatpush2.msra.mxu0 0.0
      %1047 = vmatprep.subr.mxu0 0.0
      %1048 = vmatpush2.msra.mxu0 0.0
      %1049 = vmatprep.subr.mxu0 0.0
      %1050 = vmatpush2.msra.mxu0 0.0
      %1051 = vmatprep.mubr.f32.mxu0 0.0
      %1052 = vmatmul.mubr.f32.gmra.mxu0 %v843
      %v1053 = vpop.f32.mrf.mxu0
      %v1054 = vadd.f32 0.0, %v1053
      %v1055 = vpop.f32.mrf.mxu0
      %1056 = vdwg.mxu0
      %v1058 = vsel %vm572, %v732, 0
      %1060 = vmatprep.subr.mxu0 0.0
      %1061 = vmatpush1.msra.mxu0 0.0
      %1062 = vmatprep.subr.mxu0 0.0
      %1063 = vmatpush1.msra.mxu0 0.0
      %1064 = vmatprep.subr.mxu0 0.0
      %1065 = vmatpush1.msra.mxu0 0.0
      %1066 = vmatprep.subr.mxu0 0.0
      %1067 = vmatpush1.msra.mxu0 0.0
      %1068 = vmatprep.subr.mxu0 0.0
      %1069 = vmatpush1.msra.mxu0 0.0
      %1070 = vmatprep.subr.mxu0 0.0
      %1071 = vmatpush1.msra.mxu0 0.0
      %1072 = vmatprep.subr.mxu0 0.0
      %1073 = vmatpush1.msra.mxu0 0.0
      %1074 = vmatprep.subr.mxu0 0.0
      %1075 = vmatpush1.msra.mxu0 0.0
      %1076 = vmatprep.subr.mxu0 0.0
      %1077 = vmatpush1.msra.mxu0 0.0
      %1078 = vmatprep.subr.mxu0 0.0
      %1079 = vmatpush1.msra.mxu0 0.0
      %1080 = vmatprep.subr.mxu0 0.0
      %1081 = vmatpush1.msra.mxu0 0.0
      %1082 = vmatprep.subr.mxu0 0.0
      %1083 = vmatpush1.msra.mxu0 0.0
      %1084 = vmatprep.subr.mxu0 0.0
      %1085 = vmatpush1.msra.mxu0 0.0
      %1086 = vmatprep.subr.mxu0 0.0
      %1087 = vmatpush1.msra.mxu0 0.0
      %1088 = vmatprep.subr.mxu0 %v739
      %1089 = vmatpush1.msra.mxu0 %v738
      %1090 = vmatprep.subr.mxu0 %v734
      %1091 = vmatpush1.msra.mxu0 %v733
      %1092 = vmatprep.subr.mxu0 0.0
      %1093 = vmatpush2.msra.mxu0 0.0
      %1094 = vmatprep.subr.mxu0 0.0
      %1095 = vmatpush2.msra.mxu0 0.0
      %1096 = vmatprep.subr.mxu0 0.0
      %1097 = vmatpush2.msra.mxu0 0.0
      %1098 = vmatprep.subr.mxu0 0.0
      %1099 = vmatpush2.msra.mxu0 0.0
      %1100 = vmatprep.subr.mxu0 0.0
      %1101 = vmatpush2.msra.mxu0 0.0
      %1102 = vmatprep.subr.mxu0 0.0
      %1103 = vmatpush2.msra.mxu0 0.0
      %1104 = vmatprep.subr.mxu0 0.0
      %1105 = vmatpush2.msra.mxu0 0.0
      %1106 = vmatprep.subr.mxu0 0.0
      %1107 = vmatpush2.msra.mxu0 0.0
      %1108 = vmatprep.subr.mxu0 0.0
      %1109 = vmatpush2.msra.mxu0 0.0
      %1110 = vmatprep.subr.mxu0 0.0
      %1111 = vmatpush2.msra.mxu0 0.0
      %1112 = vmatprep.subr.mxu0 0.0
      %1113 = vmatpush2.msra.mxu0 0.0
      %1114 = vmatprep.subr.mxu0 0.0
      %1115 = vmatpush2.msra.mxu0 0.0
      %1116 = vmatprep.subr.mxu0 0.0
      %1117 = vmatpush2.msra.mxu0 0.0
      %1118 = vmatprep.subr.mxu0 0.0
      %1119 = vmatpush2.msra.mxu0 0.0
      %1120 = vmatprep.subr.mxu0 0.0
      %1121 = vmatpush2.msra.mxu0 0.0
      %1122 = vmatprep.subr.mxu0 0.0
      %1123 = vmatpush2.msra.mxu0 0.0
      %1124 = vmatprep.mubr.f32.mxu0 0.0
      %1125 = vmatmul.mubr.f32.gmra.mxu0 %v1058
      %v1126 = vpop.f32.mrf.mxu0
      %v1127 = vadd.f32 %v912, %v1126
      %v1128 = vpop.f32.mrf.mxu0
      %v1129 = vadd.f32 %v914, %v1128
      %1130 = vdwg.mxu0
      %1131 = vmatprep.subr.mxu0 0.0
      %1132 = vmatpush1.msra.mxu0 0.0
      %1133 = vmatprep.subr.mxu0 0.0
      %1134 = vmatpush1.msra.mxu0 0.0
      %1135 = vmatprep.subr.mxu0 0.0
      %1136 = vmatpush1.msra.mxu0 0.0
      %1137 = vmatprep.subr.mxu0 0.0
      %1138 = vmatpush1.msra.mxu0 0.0
      %1139 = vmatprep.subr.mxu0 0.0
      %1140 = vmatpush1.msra.mxu0 0.0
      %1141 = vmatprep.subr.mxu0 0.0
      %1142 = vmatpush1.msra.mxu0 0.0
      %1143 = vmatprep.subr.mxu0 0.0
      %1144 = vmatpush1.msra.mxu0 0.0
      %1145 = vmatprep.subr.mxu0 0.0
      %1146 = vmatpush1.msra.mxu0 0.0
      %1147 = vmatprep.subr.mxu0 0.0
      %1148 = vmatpush1.msra.mxu0 0.0
      %1149 = vmatprep.subr.mxu0 0.0
      %1150 = vmatpush1.msra.mxu0 0.0
      %1151 = vmatprep.subr.mxu0 0.0
      %1152 = vmatpush1.msra.mxu0 0.0
      %1153 = vmatprep.subr.mxu0 0.0
      %1154 = vmatpush1.msra.mxu0 0.0
      %1155 = vmatprep.subr.mxu0 0.0
      %1156 = vmatpush1.msra.mxu0 0.0
      %1157 = vmatprep.subr.mxu0 0.0
      %1158 = vmatpush1.msra.mxu0 0.0
      %1159 = vmatprep.subr.mxu0 %v741
      %1160 = vmatpush1.msra.mxu0 %v740
      %1161 = vmatprep.subr.mxu0 %v736
      %1162 = vmatpush1.msra.mxu0 %v735
      %1163 = vmatprep.subr.mxu0 0.0
      %1164 = vmatpush2.msra.mxu0 0.0
      %1165 = vmatprep.subr.mxu0 0.0
      %1166 = vmatpush2.msra.mxu0 0.0
      %1167 = vmatprep.subr.mxu0 0.0
      %1168 = vmatpush2.msra.mxu0 0.0
      %1169 = vmatprep.subr.mxu0 0.0
      %1170 = vmatpush2.msra.mxu0 0.0
      %1171 = vmatprep.subr.mxu0 0.0
      %1172 = vmatpush2.msra.mxu0 0.0
      %1173 = vmatprep.subr.mxu0 0.0
      %1174 = vmatpush2.msra.mxu0 0.0
      %1175 = vmatprep.subr.mxu0 0.0
      %1176 = vmatpush2.msra.mxu0 0.0
      %1177 = vmatprep.subr.mxu0 0.0
      %1178 = vmatpush2.msra.mxu0 0.0
      %1179 = vmatprep.subr.mxu0 0.0
      %1180 = vmatpush2.msra.mxu0 0.0
      %1181 = vmatprep.subr.mxu0 0.0
      %1182 = vmatpush2.msra.mxu0 0.0
      %1183 = vmatprep.subr.mxu0 0.0
      %1184 = vmatpush2.msra.mxu0 0.0
      %1185 = vmatprep.subr.mxu0 0.0
      %1186 = vmatpush2.msra.mxu0 0.0
      %1187 = vmatprep.subr.mxu0 0.0
      %1188 = vmatpush2.msra.mxu0 0.0
      %1189 = vmatprep.subr.mxu0 0.0
      %1190 = vmatpush2.msra.mxu0 0.0
      %1191 = vmatprep.subr.mxu0 0.0
      %1192 = vmatpush2.msra.mxu0 0.0
      %1193 = vmatprep.subr.mxu0 0.0
      %1194 = vmatpush2.msra.mxu0 0.0
      %1195 = vmatprep.mubr.f32.mxu0 0.0
      %1196 = vmatmul.mubr.f32.gmra.mxu0 %v1058
      %v1197 = vpop.f32.mrf.mxu0
      %v1198 = vadd.f32 %v983, %v1197
      %v1199 = vpop.f32.mrf.mxu0
      %v1200 = vadd.f32 %v985, %v1199
      %1201 = vdwg.mxu0
      %1202 = vmatprep.subr.mxu0 0.0
      %1203 = vmatpush1.msra.mxu0 0.0
      %1204 = vmatprep.subr.mxu0 0.0
      %1205 = vmatpush1.msra.mxu0 0.0
      %1206 = vmatprep.subr.mxu0 0.0
      %1207 = vmatpush1.msra.mxu0 0.0
      %1208 = vmatprep.subr.mxu0 0.0
      %1209 = vmatpush1.msra.mxu0 0.0
      %1210 = vmatprep.subr.mxu0 0.0
      %1211 = vmatpush1.msra.mxu0 0.0
      %1212 = vmatprep.subr.mxu0 0.0
      %1213 = vmatpush1.msra.mxu0 0.0
      %1214 = vmatprep.subr.mxu0 0.0
      %1215 = vmatpush1.msra.mxu0 0.0
      %1216 = vmatprep.subr.mxu0 0.0
      %1217 = vmatpush1.msra.mxu0 0.0
      %1218 = vmatprep.subr.mxu0 0.0
      %1219 = vmatpush1.msra.mxu0 0.0
      %1220 = vmatprep.subr.mxu0 0.0
      %1221 = vmatpush1.msra.mxu0 0.0
      %1222 = vmatprep.subr.mxu0 0.0
      %1223 = vmatpush1.msra.mxu0 0.0
      %1224 = vmatprep.subr.mxu0 0.0
      %1225 = vmatpush1.msra.mxu0 0.0
      %1226 = vmatprep.subr.mxu0 0.0
      %1227 = vmatpush1.msra.mxu0 0.0
      %1228 = vmatprep.subr.mxu0 0.0
      %1229 = vmatpush1.msra.mxu0 0.0
      %1230 = vmatprep.subr.mxu0 0.0
      %1231 = vmatpush1.msra.mxu0 %v742
      %1232 = vmatprep.subr.mxu0 0.0
      %1233 = vmatpush1.msra.mxu0 %v737
      %1234 = vmatprep.subr.mxu0 0.0
      %1235 = vmatpush2.msra.mxu0 0.0
      %1236 = vmatprep.subr.mxu0 0.0
      %1237 = vmatpush2.msra.mxu0 0.0
      %1238 = vmatprep.subr.mxu0 0.0
      %1239 = vmatpush2.msra.mxu0 0.0
      %1240 = vmatprep.subr.mxu0 0.0
      %1241 = vmatpush2.msra.mxu0 0.0
      %1242 = vmatprep.subr.mxu0 0.0
      %1243 = vmatpush2.msra.mxu0 0.0
      %1244 = vmatprep.subr.mxu0 0.0
      %1245 = vmatpush2.msra.mxu0 0.0
      %1246 = vmatprep.subr.mxu0 0.0
      %1247 = vmatpush2.msra.mxu0 0.0
      %1248 = vmatprep.subr.mxu0 0.0
      %1249 = vmatpush2.msra.mxu0 0.0
      %1250 = vmatprep.subr.mxu0 0.0
      %1251 = vmatpush2.msra.mxu0 0.0
      %1252 = vmatprep.subr.mxu0 0.0
      %1253 = vmatpush2.msra.mxu0 0.0
      %1254 = vmatprep.subr.mxu0 0.0
      %1255 = vmatpush2.msra.mxu0 0.0
      %1256 = vmatprep.subr.mxu0 0.0
      %1257 = vmatpush2.msra.mxu0 0.0
      %1258 = vmatprep.subr.mxu0 0.0
      %1259 = vmatpush2.msra.mxu0 0.0
      %1260 = vmatprep.subr.mxu0 0.0
      %1261 = vmatpush2.msra.mxu0 0.0
      %1262 = vmatprep.subr.mxu0 0.0
      %1263 = vmatpush2.msra.mxu0 0.0
      %1264 = vmatprep.subr.mxu0 0.0
      %1265 = vmatpush2.msra.mxu0 0.0
      %1266 = vmatprep.mubr.f32.mxu0 0.0
      %1267 = vmatmul.mubr.f32.gmra.mxu0 %v1058
      %v1268 = vpop.f32.mrf.mxu0
      %v1269 = vadd.f32 %v1054, %v1268
      %v1270 = vpop.f32.mrf.mxu0
      %1271 = vdwg.mxu0
      %1272 = vmatprep.subr.mxu0 0.0
      %1273 = vmatpush1.msra.mxu0 0.0
      %1274 = vmatprep.subr.mxu0 0.0
      %1275 = vmatpush1.msra.mxu0 0.0
      %1276 = vmatprep.subr.mxu0 0.0
      %1277 = vmatpush1.msra.mxu0 0.0
      %1278 = vmatprep.subr.mxu0 0.0
      %1279 = vmatpush1.msra.mxu0 0.0
      %1280 = vmatprep.subr.mxu0 0.0
      %1281 = vmatpush1.msra.mxu0 0.0
      %1282 = vmatprep.subr.mxu0 0.0
      %1283 = vmatpush1.msra.mxu0 0.0
      %1284 = vmatprep.subr.mxu0 0.0
      %1285 = vmatpush1.msra.mxu0 0.0
      %1286 = vmatprep.subr.mxu0 0.0
      %1287 = vmatpush1.msra.mxu0 0.0
      %1288 = vmatprep.subr.mxu0 0.0
      %1289 = vmatpush1.msra.mxu0 0.0
      %1290 = vmatprep.subr.mxu0 0.0
      %1291 = vmatpush1.msra.mxu0 0.0
      %1292 = vmatprep.subr.mxu0 0.0
      %1293 = vmatpush1.msra.mxu0 0.0
      %1294 = vmatprep.subr.mxu0 0.0
      %1295 = vmatpush1.msra.mxu0 0.0
      %1296 = vmatprep.subr.mxu0 0.0
      %1297 = vmatpush1.msra.mxu0 0.0
      %1298 = vmatprep.subr.mxu0 0.0
      %1299 = vmatpush1.msra.mxu0 0.0
      %1300 = vmatprep.subr.mxu0 %v769
      %1301 = vmatpush1.msra.mxu0 %v768
      %1302 = vmatprep.subr.mxu0 %v764
      %1303 = vmatpush1.msra.mxu0 %v763
      %1304 = vmatprep.subr.mxu0 0.0
      %1305 = vmatpush2.msra.mxu0 0.0
      %1306 = vmatprep.subr.mxu0 0.0
      %1307 = vmatpush2.msra.mxu0 0.0
      %1308 = vmatprep.subr.mxu0 0.0
      %1309 = vmatpush2.msra.mxu0 0.0
      %1310 = vmatprep.subr.mxu0 0.0
      %1311 = vmatpush2.msra.mxu0 0.0
      %1312 = vmatprep.subr.mxu0 0.0
      %1313 = vmatpush2.msra.mxu0 0.0
      %1314 = vmatprep.subr.mxu0 0.0
      %1315 = vmatpush2.msra.mxu0 0.0
      %1316 = vmatprep.subr.mxu0 0.0
      %1317 = vmatpush2.msra.mxu0 0.0
      %1318 = vmatprep.subr.mxu0 0.0
      %1319 = vmatpush2.msra.mxu0 0.0
      %1320 = vmatprep.subr.mxu0 0.0
      %1321 = vmatpush2.msra.mxu0 0.0
      %1322 = vmatprep.subr.mxu0 0.0
      %1323 = vmatpush2.msra.mxu0 0.0
      %1324 = vmatprep.subr.mxu0 0.0
      %1325 = vmatpush2.msra.mxu0 0.0
      %1326 = vmatprep.subr.mxu0 0.0
      %1327 = vmatpush2.msra.mxu0 0.0
      %1328 = vmatprep.subr.mxu0 0.0
      %1329 = vmatpush2.msra.mxu0 0.0
      %1330 = vmatprep.subr.mxu0 0.0
      %1331 = vmatpush2.msra.mxu0 0.0
      %1332 = vmatprep.subr.mxu0 0.0
      %1333 = vmatpush2.msra.mxu0 0.0
      %1334 = vmatprep.subr.mxu0 0.0
      %1335 = vmatpush2.msra.mxu0 0.0
      %1336 = vmatprep.mubr.f32.mxu0 0.0
      %1337 = vmatmul.mubr.f32.gmra.mxu0 %v843
      %v1338 = vpop.f32.mrf.mxu0
      %v1339 = vadd.f32 0.0, %v1338
      %v1340 = vpop.f32.mrf.mxu0
      %v1341 = vadd.f32 0.0, %v1340
      %1342 = vdwg.mxu0
      %1343 = vmatprep.subr.mxu0 0.0
      %1344 = vmatpush1.msra.mxu0 0.0
      %1345 = vmatprep.subr.mxu0 0.0
      %1346 = vmatpush1.msra.mxu0 0.0
      %1347 = vmatprep.subr.mxu0 0.0
      %1348 = vmatpush1.msra.mxu0 0.0
      %1349 = vmatprep.subr.mxu0 0.0
      %1350 = vmatpush1.msra.mxu0 0.0
      %1351 = vmatprep.subr.mxu0 0.0
      %1352 = vmatpush1.msra.mxu0 0.0
      %1353 = vmatprep.subr.mxu0 0.0
      %1354 = vmatpush1.msra.mxu0 0.0
      %1355 = vmatprep.subr.mxu0 0.0
      %1356 = vmatpush1.msra.mxu0 0.0
      %1357 = vmatprep.subr.mxu0 0.0
      %1358 = vmatpush1.msra.mxu0 0.0
      %1359 = vmatprep.subr.mxu0 0.0
      %1360 = vmatpush1.msra.mxu0 0.0
      %1361 = vmatprep.subr.mxu0 0.0
      %1362 = vmatpush1.msra.mxu0 0.0
      %1363 = vmatprep.subr.mxu0 0.0
      %1364 = vmatpush1.msra.mxu0 0.0
      %1365 = vmatprep.subr.mxu0 0.0
      %1366 = vmatpush1.msra.mxu0 0.0
      %1367 = vmatprep.subr.mxu0 0.0
      %1368 = vmatpush1.msra.mxu0 0.0
      %1369 = vmatprep.subr.mxu0 0.0
      %1370 = vmatpush1.msra.mxu0 0.0
      %1371 = vmatprep.subr.mxu0 %v771
      %1372 = vmatpush1.msra.mxu0 %v770
      %1373 = vmatprep.subr.mxu0 %v766
      %1374 = vmatpush1.msra.mxu0 %v765
      %1375 = vmatprep.subr.mxu0 0.0
      %1376 = vmatpush2.msra.mxu0 0.0
      %1377 = vmatprep.subr.mxu0 0.0
      %1378 = vmatpush2.msra.mxu0 0.0
      %1379 = vmatprep.subr.mxu0 0.0
      %1380 = vmatpush2.msra.mxu0 0.0
      %1381 = vmatprep.subr.mxu0 0.0
      %1382 = vmatpush2.msra.mxu0 0.0
      %1383 = vmatprep.subr.mxu0 0.0
      %1384 = vmatpush2.msra.mxu0 0.0
      %1385 = vmatprep.subr.mxu0 0.0
      %1386 = vmatpush2.msra.mxu0 0.0
      %1387 = vmatprep.subr.mxu0 0.0
      %1388 = vmatpush2.msra.mxu0 0.0
      %1389 = vmatprep.subr.mxu0 0.0
      %1390 = vmatpush2.msra.mxu0 0.0
      %1391 = vmatprep.subr.mxu0 0.0
      %1392 = vmatpush2.msra.mxu0 0.0
      %1393 = vmatprep.subr.mxu0 0.0
      %1394 = vmatpush2.msra.mxu0 0.0
      %1395 = vmatprep.subr.mxu0 0.0
      %1396 = vmatpush2.msra.mxu0 0.0
      %1397 = vmatprep.subr.mxu0 0.0
      %1398 = vmatpush2.msra.mxu0 0.0
      %1399 = vmatprep.subr.mxu0 0.0
      %1400 = vmatpush2.msra.mxu0 0.0
      %1401 = vmatprep.subr.mxu0 0.0
      %1402 = vmatpush2.msra.mxu0 0.0
      %1403 = vmatprep.subr.mxu0 0.0
      %1404 = vmatpush2.msra.mxu0 0.0
      %1405 = vmatprep.subr.mxu0 0.0
      %1406 = vmatpush2.msra.mxu0 0.0
      %1407 = vmatprep.mubr.f32.mxu0 0.0
      %1408 = vmatmul.mubr.f32.gmra.mxu0 %v843
      %v1409 = vpop.f32.mrf.mxu0
      %v1410 = vadd.f32 0.0, %v1409
      %v1411 = vpop.f32.mrf.mxu0
      %v1412 = vadd.f32 0.0, %v1411
      %1413 = vdwg.mxu0
      %1414 = vmatprep.subr.mxu0 0.0
      %1415 = vmatpush1.msra.mxu0 0.0
      %1416 = vmatprep.subr.mxu0 0.0
      %1417 = vmatpush1.msra.mxu0 0.0
      %1418 = vmatprep.subr.mxu0 0.0
      %1419 = vmatpush1.msra.mxu0 0.0
      %1420 = vmatprep.subr.mxu0 0.0
      %1421 = vmatpush1.msra.mxu0 0.0
      %1422 = vmatprep.subr.mxu0 0.0
      %1423 = vmatpush1.msra.mxu0 0.0
      %1424 = vmatprep.subr.mxu0 0.0
      %1425 = vmatpush1.msra.mxu0 0.0
      %1426 = vmatprep.subr.mxu0 0.0
      %1427 = vmatpush1.msra.mxu0 0.0
      %1428 = vmatprep.subr.mxu0 0.0
      %1429 = vmatpush1.msra.mxu0 0.0
      %1430 = vmatprep.subr.mxu0 0.0
      %1431 = vmatpush1.msra.mxu0 0.0
      %1432 = vmatprep.subr.mxu0 0.0
      %1433 = vmatpush1.msra.mxu0 0.0
      %1434 = vmatprep.subr.mxu0 0.0
      %1435 = vmatpush1.msra.mxu0 0.0
      %1436 = vmatprep.subr.mxu0 0.0
      %1437 = vmatpush1.msra.mxu0 0.0
      %1438 = vmatprep.subr.mxu0 0.0
      %1439 = vmatpush1.msra.mxu0 0.0
      %1440 = vmatprep.subr.mxu0 0.0
      %1441 = vmatpush1.msra.mxu0 0.0
      %1442 = vmatprep.subr.mxu0 0.0
      %1443 = vmatpush1.msra.mxu0 %v772
      %1444 = vmatprep.subr.mxu0 0.0
      %1445 = vmatpush1.msra.mxu0 %v767
      %1446 = vmatprep.subr.mxu0 0.0
      %1447 = vmatpush2.msra.mxu0 0.0
      %1448 = vmatprep.subr.mxu0 0.0
      %1449 = vmatpush2.msra.mxu0 0.0
      %1450 = vmatprep.subr.mxu0 0.0
      %1451 = vmatpush2.msra.mxu0 0.0
      %1452 = vmatprep.subr.mxu0 0.0
      %1453 = vmatpush2.msra.mxu0 0.0
      %1454 = vmatprep.subr.mxu0 0.0
      %1455 = vmatpush2.msra.mxu0 0.0
      %1456 = vmatprep.subr.mxu0 0.0
      %1457 = vmatpush2.msra.mxu0 0.0
      %1458 = vmatprep.subr.mxu0 0.0
      %1459 = vmatpush2.msra.mxu0 0.0
      %1460 = vmatprep.subr.mxu0 0.0
      %1461 = vmatpush2.msra.mxu0 0.0
      %1462 = vmatprep.subr.mxu0 0.0
      %1463 = vmatpush2.msra.mxu0 0.0
      %1464 = vmatprep.subr.mxu0 0.0
      %1465 = vmatpush2.msra.mxu0 0.0
      %1466 = vmatprep.subr.mxu0 0.0
      %1467 = vmatpush2.msra.mxu0 0.0
      %1468 = vmatprep.subr.mxu0 0.0
      %1469 = vmatpush2.msra.mxu0 0.0
      %1470 = vmatprep.subr.mxu0 0.0
      %1471 = vmatpush2.msra.mxu0 0.0
      %1472 = vmatprep.subr.mxu0 0.0
      %1473 = vmatpush2.msra.mxu0 0.0
      %1474 = vmatprep.subr.mxu0 0.0
      %1475 = vmatpush2.msra.mxu0 0.0
      %1476 = vmatprep.subr.mxu0 0.0
      %1477 = vmatpush2.msra.mxu0 0.0
      %1478 = vmatprep.mubr.f32.mxu0 0.0
      %1479 = vmatmul.mubr.f32.gmra.mxu0 %v843
      %v1480 = vpop.f32.mrf.mxu0
      %v1481 = vadd.f32 0.0, %v1480
      %v1482 = vpop.f32.mrf.mxu0
      %1483 = vdwg.mxu0
      %1484 = vmatprep.subr.mxu0 0.0
      %1485 = vmatpush1.msra.mxu0 0.0
      %1486 = vmatprep.subr.mxu0 0.0
      %1487 = vmatpush1.msra.mxu0 0.0
      %1488 = vmatprep.subr.mxu0 0.0
      %1489 = vmatpush1.msra.mxu0 0.0
      %1490 = vmatprep.subr.mxu0 0.0
      %1491 = vmatpush1.msra.mxu0 0.0
      %1492 = vmatprep.subr.mxu0 0.0
      %1493 = vmatpush1.msra.mxu0 0.0
      %1494 = vmatprep.subr.mxu0 0.0
      %1495 = vmatpush1.msra.mxu0 0.0
      %1496 = vmatprep.subr.mxu0 0.0
      %1497 = vmatpush1.msra.mxu0 0.0
      %1498 = vmatprep.subr.mxu0 0.0
      %1499 = vmatpush1.msra.mxu0 0.0
      %1500 = vmatprep.subr.mxu0 0.0
      %1501 = vmatpush1.msra.mxu0 0.0
      %1502 = vmatprep.subr.mxu0 0.0
      %1503 = vmatpush1.msra.mxu0 0.0
      %1504 = vmatprep.subr.mxu0 0.0
      %1505 = vmatpush1.msra.mxu0 0.0
      %1506 = vmatprep.subr.mxu0 0.0
      %1507 = vmatpush1.msra.mxu0 0.0
      %1508 = vmatprep.subr.mxu0 0.0
      %1509 = vmatpush1.msra.mxu0 0.0
      %1510 = vmatprep.subr.mxu0 0.0
      %1511 = vmatpush1.msra.mxu0 0.0
      %1512 = vmatprep.subr.mxu0 %v759
      %1513 = vmatpush1.msra.mxu0 %v758
      %1514 = vmatprep.subr.mxu0 %v754
      %1515 = vmatpush1.msra.mxu0 %v753
      %1516 = vmatprep.subr.mxu0 0.0
      %1517 = vmatpush2.msra.mxu0 0.0
      %1518 = vmatprep.subr.mxu0 0.0
      %1519 = vmatpush2.msra.mxu0 0.0
      %1520 = vmatprep.subr.mxu0 0.0
      %1521 = vmatpush2.msra.mxu0 0.0
      %1522 = vmatprep.subr.mxu0 0.0
      %1523 = vmatpush2.msra.mxu0 0.0
      %1524 = vmatprep.subr.mxu0 0.0
      %1525 = vmatpush2.msra.mxu0 0.0
      %1526 = vmatprep.subr.mxu0 0.0
      %1527 = vmatpush2.msra.mxu0 0.0
      %1528 = vmatprep.subr.mxu0 0.0
      %1529 = vmatpush2.msra.mxu0 0.0
      %1530 = vmatprep.subr.mxu0 0.0
      %1531 = vmatpush2.msra.mxu0 0.0
      %1532 = vmatprep.subr.mxu0 0.0
      %1533 = vmatpush2.msra.mxu0 0.0
      %1534 = vmatprep.subr.mxu0 0.0
      %1535 = vmatpush2.msra.mxu0 0.0
      %1536 = vmatprep.subr.mxu0 0.0
      %1537 = vmatpush2.msra.mxu0 0.0
      %1538 = vmatprep.subr.mxu0 0.0
      %1539 = vmatpush2.msra.mxu0 0.0
      %1540 = vmatprep.subr.mxu0 0.0
      %1541 = vmatpush2.msra.mxu0 0.0
      %1542 = vmatprep.subr.mxu0 0.0
      %1543 = vmatpush2.msra.mxu0 0.0
      %1544 = vmatprep.subr.mxu0 0.0
      %1545 = vmatpush2.msra.mxu0 0.0
      %1546 = vmatprep.subr.mxu0 0.0
      %1547 = vmatpush2.msra.mxu0 0.0
      %1548 = vmatprep.mubr.f32.mxu0 0.0
      %1549 = vmatmul.mubr.f32.gmra.mxu0 %v1058
      %v1550 = vpop.f32.mrf.mxu0
      %v1551 = vadd.f32 %v1339, %v1550
      %v1552 = vpop.f32.mrf.mxu0
      %v1553 = vadd.f32 %v1341, %v1552
      %1554 = vdwg.mxu0
      %1555 = vmatprep.subr.mxu0 0.0
      %1556 = vmatpush1.msra.mxu0 0.0
      %1557 = vmatprep.subr.mxu0 0.0
      %1558 = vmatpush1.msra.mxu0 0.0
      %1559 = vmatprep.subr.mxu0 0.0
      %1560 = vmatpush1.msra.mxu0 0.0
      %1561 = vmatprep.subr.mxu0 0.0
      %1562 = vmatpush1.msra.mxu0 0.0
      %1563 = vmatprep.subr.mxu0 0.0
      %1564 = vmatpush1.msra.mxu0 0.0
      %1565 = vmatprep.subr.mxu0 0.0
      %1566 = vmatpush1.msra.mxu0 0.0
      %1567 = vmatprep.subr.mxu0 0.0
      %1568 = vmatpush1.msra.mxu0 0.0
      %1569 = vmatprep.subr.mxu0 0.0
      %1570 = vmatpush1.msra.mxu0 0.0
      %1571 = vmatprep.subr.mxu0 0.0
      %1572 = vmatpush1.msra.mxu0 0.0
      %1573 = vmatprep.subr.mxu0 0.0
      %1574 = vmatpush1.msra.mxu0 0.0
      %1575 = vmatprep.subr.mxu0 0.0
      %1576 = vmatpush1.msra.mxu0 0.0
      %1577 = vmatprep.subr.mxu0 0.0
      %1578 = vmatpush1.msra.mxu0 0.0
      %1579 = vmatprep.subr.mxu0 0.0
      %1580 = vmatpush1.msra.mxu0 0.0
      %1581 = vmatprep.subr.mxu0 0.0
      %1582 = vmatpush1.msra.mxu0 0.0
      %1583 = vmatprep.subr.mxu0 %v761
      %1584 = vmatpush1.msra.mxu0 %v760
      %1585 = vmatprep.subr.mxu0 %v756
      %1586 = vmatpush1.msra.mxu0 %v755
      %1587 = vmatprep.subr.mxu0 0.0
      %1588 = vmatpush2.msra.mxu0 0.0
      %1589 = vmatprep.subr.mxu0 0.0
      %1590 = vmatpush2.msra.mxu0 0.0
      %1591 = vmatprep.subr.mxu0 0.0
      %1592 = vmatpush2.msra.mxu0 0.0
      %1593 = vmatprep.subr.mxu0 0.0
      %1594 = vmatpush2.msra.mxu0 0.0
      %1595 = vmatprep.subr.mxu0 0.0
      %1596 = vmatpush2.msra.mxu0 0.0
      %1597 = vmatprep.subr.mxu0 0.0
      %1598 = vmatpush2.msra.mxu0 0.0
      %1599 = vmatprep.subr.mxu0 0.0
      %1600 = vmatpush2.msra.mxu0 0.0
      %1601 = vmatprep.subr.mxu0 0.0
      %1602 = vmatpush2.msra.mxu0 0.0
      %1603 = vmatprep.subr.mxu0 0.0
      %1604 = vmatpush2.msra.mxu0 0.0
      %1605 = vmatprep.subr.mxu0 0.0
      %1606 = vmatpush2.msra.mxu0 0.0
      %1607 = vmatprep.subr.mxu0 0.0
      %1608 = vmatpush2.msra.mxu0 0.0
      %1609 = vmatprep.subr.mxu0 0.0
      %1610 = vmatpush2.msra.mxu0 0.0
      %1611 = vmatprep.subr.mxu0 0.0
      %1612 = vmatpush2.msra.mxu0 0.0
      %1613 = vmatprep.subr.mxu0 0.0
      %1614 = vmatpush2.msra.mxu0 0.0
      %1615 = vmatprep.subr.mxu0 0.0
      %1616 = vmatpush2.msra.mxu0 0.0
      %1617 = vmatprep.subr.mxu0 0.0
      %1618 = vmatpush2.msra.mxu0 0.0
      %1619 = vmatprep.mubr.f32.mxu0 0.0
      %1620 = vmatmul.mubr.f32.gmra.mxu0 %v1058
      %v1621 = vpop.f32.mrf.mxu0
      %v1622 = vadd.f32 %v1410, %v1621
      %v1623 = vpop.f32.mrf.mxu0
      %v1624 = vadd.f32 %v1412, %v1623
      %1625 = vdwg.mxu0
      %1626 = vmatprep.subr.mxu0 0.0
      %1627 = vmatpush1.msra.mxu0 0.0
      %1628 = vmatprep.subr.mxu0 0.0
      %1629 = vmatpush1.msra.mxu0 0.0
      %1630 = vmatprep.subr.mxu0 0.0
      %1631 = vmatpush1.msra.mxu0 0.0
      %1632 = vmatprep.subr.mxu0 0.0
      %1633 = vmatpush1.msra.mxu0 0.0
      %1634 = vmatprep.subr.mxu0 0.0
      %1635 = vmatpush1.msra.mxu0 0.0
      %1636 = vmatprep.subr.mxu0 0.0
      %1637 = vmatpush1.msra.mxu0 0.0
      %1638 = vmatprep.subr.mxu0 0.0
      %1639 = vmatpush1.msra.mxu0 0.0
      %1640 = vmatprep.subr.mxu0 0.0
      %1641 = vmatpush1.msra.mxu0 0.0
      %1642 = vmatprep.subr.mxu0 0.0
      %1643 = vmatpush1.msra.mxu0 0.0
      %1644 = vmatprep.subr.mxu0 0.0
      %1645 = vmatpush1.msra.mxu0 0.0
      %1646 = vmatprep.subr.mxu0 0.0
      %1647 = vmatpush1.msra.mxu0 0.0
      %1648 = vmatprep.subr.mxu0 0.0
      %1649 = vmatpush1.msra.mxu0 0.0
      %1650 = vmatprep.subr.mxu0 0.0
      %1651 = vmatpush1.msra.mxu0 0.0
      %1652 = vmatprep.subr.mxu0 0.0
      %1653 = vmatpush1.msra.mxu0 0.0
      %1654 = vmatprep.subr.mxu0 0.0
      %1655 = vmatpush1.msra.mxu0 %v762
      %1656 = vmatprep.subr.mxu0 0.0
      %1657 = vmatpush1.msra.mxu0 %v757
      %1658 = vmatprep.subr.mxu0 0.0
      %1659 = vmatpush2.msra.mxu0 0.0
      %1660 = vmatprep.subr.mxu0 0.0
      %1661 = vmatpush2.msra.mxu0 0.0
      %1662 = vmatprep.subr.mxu0 0.0
      %1663 = vmatpush2.msra.mxu0 0.0
      %1664 = vmatprep.subr.mxu0 0.0
      %1665 = vmatpush2.msra.mxu0 0.0
      %1666 = vmatprep.subr.mxu0 0.0
      %1667 = vmatpush2.msra.mxu0 0.0
      %1668 = vmatprep.subr.mxu0 0.0
      %1669 = vmatpush2.msra.mxu0 0.0
      %1670 = vmatprep.subr.mxu0 0.0
      %1671 = vmatpush2.msra.mxu0 0.0
      %1672 = vmatprep.subr.mxu0 0.0
      %1673 = vmatpush2.msra.mxu0 0.0
      %1674 = vmatprep.subr.mxu0 0.0
      %1675 = vmatpush2.msra.mxu0 0.0
      %1676 = vmatprep.subr.mxu0 0.0
      %1677 = vmatpush2.msra.mxu0 0.0
      %1678 = vmatprep.subr.mxu0 0.0
      %1679 = vmatpush2.msra.mxu0 0.0
      %1680 = vmatprep.subr.mxu0 0.0
      %1681 = vmatpush2.msra.mxu0 0.0
      %1682 = vmatprep.subr.mxu0 0.0
      %1683 = vmatpush2.msra.mxu0 0.0
      %1684 = vmatprep.subr.mxu0 0.0
      %1685 = vmatpush2.msra.mxu0 0.0
      %1686 = vmatprep.subr.mxu0 0.0
      %1687 = vmatpush2.msra.mxu0 0.0
      %1688 = vmatprep.subr.mxu0 0.0
      %1689 = vmatpush2.msra.mxu0 0.0
      %1690 = vmatprep.mubr.f32.mxu0 0.0
      %1691 = vmatmul.mubr.f32.gmra.mxu0 %v1058
      %v1692 = vpop.f32.mrf.mxu0
      %v1693 = vadd.f32 %v1481, %v1692
      %v1694 = vpop.f32.mrf.mxu0
      %1695 = vdwg.mxu0
      %v1696 = vmul.f32 %v1127, %v1551
      %v1697 = vmul.f32 %v1129, %v1553
      %v1698 = vmul.f32 %v1198, %v1622
      %v1699 = vmul.f32 %v1200, %v1624
      %v1700 = vmul.f32 %v1269, %v1693
      %v1702 = vsel %vm572, %v1700, 0
      %1704 = vmatprep.subr.mxu0 0.0
      %1705 = vmatpush1.msra.mxu0 %v790
      %1706 = vmatprep.subr.mxu0 0.0
      %1707 = vmatpush1.msra.mxu0 %v789
      %1708 = vmatprep.subr.mxu0 0.0
      %1709 = vmatpush1.msra.mxu0 %v788
      %1710 = vmatprep.subr.mxu0 0.0
      %1711 = vmatpush1.msra.mxu0 %v787
      %1712 = vmatprep.subr.mxu0 0.0
      %1713 = vmatpush1.msra.mxu0 %v786
      %1714 = vmatprep.subr.mxu0 0.0
      %1715 = vmatpush1.msra.mxu0 %v785
      %1716 = vmatprep.subr.mxu0 0.0
      %1717 = vmatpush1.msra.mxu0 %v784
      %1718 = vmatprep.subr.mxu0 0.0
      %1719 = vmatpush1.msra.mxu0 %v783
      %1720 = vmatprep.subr.mxu0 0.0
      %1721 = vmatpush1.msra.mxu0 %v782
      %1722 = vmatprep.subr.mxu0 0.0
      %1723 = vmatpush1.msra.mxu0 %v781
      %1724 = vmatprep.subr.mxu0 0.0
      %1725 = vmatpush1.msra.mxu0 %v780
      %1726 = vmatprep.subr.mxu0 0.0
      %1727 = vmatpush1.msra.mxu0 %v779
      %1728 = vmatprep.subr.mxu0 0.0
      %1729 = vmatpush1.msra.mxu0 %v778
      %1730 = vmatprep.subr.mxu0 0.0
      %1731 = vmatpush1.msra.mxu0 %v777
      %1732 = vmatprep.subr.mxu0 0.0
      %1733 = vmatpush1.msra.mxu0 %v776
      %1734 = vmatprep.subr.mxu0 0.0
      %1735 = vmatpush1.msra.mxu0 %v775
      %1736 = vmatprep.subr.mxu0 0.0
      %1737 = vmatpush2.msra.mxu0 %v806
      %1738 = vmatprep.subr.mxu0 0.0
      %1739 = vmatpush2.msra.mxu0 %v805
      %1740 = vmatprep.subr.mxu0 0.0
      %1741 = vmatpush2.msra.mxu0 %v804
      %1742 = vmatprep.subr.mxu0 0.0
      %1743 = vmatpush2.msra.mxu0 %v803
      %1744 = vmatprep.subr.mxu0 0.0
      %1745 = vmatpush2.msra.mxu0 %v802
      %1746 = vmatprep.subr.mxu0 0.0
      %1747 = vmatpush2.msra.mxu0 %v801
      %1748 = vmatprep.subr.mxu0 0.0
      %1749 = vmatpush2.msra.mxu0 %v800
      %1750 = vmatprep.subr.mxu0 0.0
      %1751 = vmatpush2.msra.mxu0 %v799
      %1752 = vmatprep.subr.mxu0 0.0
      %1753 = vmatpush2.msra.mxu0 %v798
      %1754 = vmatprep.subr.mxu0 0.0
      %1755 = vmatpush2.msra.mxu0 %v797
      %1756 = vmatprep.subr.mxu0 0.0
      %1757 = vmatpush2.msra.mxu0 %v796
      %1758 = vmatprep.subr.mxu0 0.0
      %1759 = vmatpush2.msra.mxu0 %v795
      %1760 = vmatprep.subr.mxu0 0.0
      %1761 = vmatpush2.msra.mxu0 %v794
      %1762 = vmatprep.subr.mxu0 0.0
      %1763 = vmatpush2.msra.mxu0 %v793
      %1764 = vmatprep.subr.mxu0 0.0
      %1765 = vmatpush2.msra.mxu0 %v792
      %1766 = vmatprep.subr.mxu0 0.0
      %1767 = vmatpush2.msra.mxu0 %v791
      %1768 = vmatprep.mubr.f32.mxu0 %v1697
      %1769 = vmatmul.mubr.f32.gmra.mxu0 %v1696
      %v1770 = vpop.f32.mrf.mxu0
      %v1771 = vadd.f32 0.0, %v1770
      %v1772 = vpop.f32.mrf.mxu0
      %1773 = vdwg.mxu0
      %1774 = vmatprep.subr.mxu0 0.0
      %1775 = vmatpush1.msra.mxu0 %v822
      %1776 = vmatprep.subr.mxu0 0.0
      %1777 = vmatpush1.msra.mxu0 %v821
      %1778 = vmatprep.subr.mxu0 0.0
      %1779 = vmatpush1.msra.mxu0 %v820
      %1780 = vmatprep.subr.mxu0 0.0
      %1781 = vmatpush1.msra.mxu0 %v819
      %1782 = vmatprep.subr.mxu0 0.0
      %1783 = vmatpush1.msra.mxu0 %v818
      %1784 = vmatprep.subr.mxu0 0.0
      %1785 = vmatpush1.msra.mxu0 %v817
      %1786 = vmatprep.subr.mxu0 0.0
      %1787 = vmatpush1.msra.mxu0 %v816
      %1788 = vmatprep.subr.mxu0 0.0
      %1789 = vmatpush1.msra.mxu0 %v815
      %1790 = vmatprep.subr.mxu0 0.0
      %1791 = vmatpush1.msra.mxu0 %v814
      %1792 = vmatprep.subr.mxu0 0.0
      %1793 = vmatpush1.msra.mxu0 %v813
      %1794 = vmatprep.subr.mxu0 0.0
      %1795 = vmatpush1.msra.mxu0 %v812
      %1796 = vmatprep.subr.mxu0 0.0
      %1797 = vmatpush1.msra.mxu0 %v811
      %1798 = vmatprep.subr.mxu0 0.0
      %1799 = vmatpush1.msra.mxu0 %v810
      %1800 = vmatprep.subr.mxu0 0.0
      %1801 = vmatpush1.msra.mxu0 %v809
      %1802 = vmatprep.subr.mxu0 0.0
      %1803 = vmatpush1.msra.mxu0 %v808
      %1804 = vmatprep.subr.mxu0 0.0
      %1805 = vmatpush1.msra.mxu0 %v807
      %1806 = vmatprep.subr.mxu0 0.0
      %1807 = vmatpush2.msra.mxu0 %v838
      %1808 = vmatprep.subr.mxu0 0.0
      %1809 = vmatpush2.msra.mxu0 %v837
      %1810 = vmatprep.subr.mxu0 0.0
      %1811 = vmatpush2.msra.mxu0 %v836
      %1812 = vmatprep.subr.mxu0 0.0
      %1813 = vmatpush2.msra.mxu0 %v835
      %1814 = vmatprep.subr.mxu0 0.0
      %1815 = vmatpush2.msra.mxu0 %v834
      %1816 = vmatprep.subr.mxu0 0.0
      %1817 = vmatpush2.msra.mxu0 %v833
      %1818 = vmatprep.subr.mxu0 0.0
      %1819 = vmatpush2.msra.mxu0 %v832
      %1820 = vmatprep.subr.mxu0 0.0
      %1821 = vmatpush2.msra.mxu0 %v831
      %1822 = vmatprep.subr.mxu0 0.0
      %1823 = vmatpush2.msra.mxu0 %v830
      %1824 = vmatprep.subr.mxu0 0.0
      %1825 = vmatpush2.msra.mxu0 %v829
      %1826 = vmatprep.subr.mxu0 0.0
      %1827 = vmatpush2.msra.mxu0 %v828
      %1828 = vmatprep.subr.mxu0 0.0
      %1829 = vmatpush2.msra.mxu0 %v827
      %1830 = vmatprep.subr.mxu0 0.0
      %1831 = vmatpush2.msra.mxu0 %v826
      %1832 = vmatprep.subr.mxu0 0.0
      %1833 = vmatpush2.msra.mxu0 %v825
      %1834 = vmatprep.subr.mxu0 0.0
      %1835 = vmatpush2.msra.mxu0 %v824
      %1836 = vmatprep.subr.mxu0 0.0
      %1837 = vmatpush2.msra.mxu0 %v823
      %1838 = vmatprep.mubr.f32.mxu0 %v1699
      %1839 = vmatmul.mubr.f32.gmra.mxu0 %v1698
      %v1840 = vpop.f32.mrf.mxu0
      %v1841 = vadd.f32 %v1771, %v1840
      %v1842 = vpop.f32.mrf.mxu0
      %1843 = vdwg.mxu0
      %1844 = vmatprep.subr.mxu0 0.0
      %1845 = vmatpush1.msra.mxu0 0.0
      %1846 = vmatprep.subr.mxu0 0.0
      %1847 = vmatpush1.msra.mxu0 0.0
      %1848 = vmatprep.subr.mxu0 0.0
      %1849 = vmatpush1.msra.mxu0 0.0
      %1850 = vmatprep.subr.mxu0 0.0
      %1851 = vmatpush1.msra.mxu0 0.0
      %1852 = vmatprep.subr.mxu0 0.0
      %1853 = vmatpush1.msra.mxu0 0.0
      %1854 = vmatprep.subr.mxu0 0.0
      %1855 = vmatpush1.msra.mxu0 0.0
      %1856 = vmatprep.subr.mxu0 0.0
      %1857 = vmatpush1.msra.mxu0 0.0
      %1858 = vmatprep.subr.mxu0 0.0
      %1859 = vmatpush1.msra.mxu0 0.0
      %1860 = vmatprep.subr.mxu0 0.0
      %1861 = vmatpush1.msra.mxu0 0.0
      %1862 = vmatprep.subr.mxu0 0.0
      %1863 = vmatpush1.msra.mxu0 0.0
      %1864 = vmatprep.subr.mxu0 0.0
      %1865 = vmatpush1.msra.mxu0 0.0
      %1866 = vmatprep.subr.mxu0 0.0
      %1867 = vmatpush1.msra.mxu0 0.0
      %1868 = vmatprep.subr.mxu0 0.0
      %1869 = vmatpush1.msra.mxu0 0.0
      %1870 = vmatprep.subr.mxu0 0.0
      %1871 = vmatpush1.msra.mxu0 0.0
      %1872 = vmatprep.subr.mxu0 0.0
      %1873 = vmatpush1.msra.mxu0 %v840
      %1874 = vmatprep.subr.mxu0 0.0
      %1875 = vmatpush1.msra.mxu0 %v839
      %1876 = vmatprep.subr.mxu0 0.0
      %1877 = vmatpush2.msra.mxu0 0.0
      %1878 = vmatprep.subr.mxu0 0.0
      %1879 = vmatpush2.msra.mxu0 0.0
      %1880 = vmatprep.subr.mxu0 0.0
      %1881 = vmatpush2.msra.mxu0 0.0
      %1882 = vmatprep.subr.mxu0 0.0
      %1883 = vmatpush2.msra.mxu0 0.0
      %1884 = vmatprep.subr.mxu0 0.0
      %1885 = vmatpush2.msra.mxu0 0.0
      %1886 = vmatprep.subr.mxu0 0.0
      %1887 = vmatpush2.msra.mxu0 0.0
      %1888 = vmatprep.subr.mxu0 0.0
      %1889 = vmatpush2.msra.mxu0 0.0
      %1890 = vmatprep.subr.mxu0 0.0
      %1891 = vmatpush2.msra.mxu0 0.0
      %1892 = vmatprep.subr.mxu0 0.0
      %1893 = vmatpush2.msra.mxu0 0.0
      %1894 = vmatprep.subr.mxu0 0.0
      %1895 = vmatpush2.msra.mxu0 0.0
      %1896 = vmatprep.subr.mxu0 0.0
      %1897 = vmatpush2.msra.mxu0 0.0
      %1898 = vmatprep.subr.mxu0 0.0
      %1899 = vmatpush2.msra.mxu0 0.0
      %1900 = vmatprep.subr.mxu0 0.0
      %1901 = vmatpush2.msra.mxu0 0.0
      %1902 = vmatprep.subr.mxu0 0.0
      %1903 = vmatpush2.msra.mxu0 0.0
      %1904 = vmatprep.subr.mxu0 0.0
      %1905 = vmatpush2.msra.mxu0 0.0
      %1906 = vmatprep.subr.mxu0 0.0
      %1907 = vmatpush2.msra.mxu0 0.0
      %1908 = vmatprep.mubr.f32.mxu0 0.0
      %1909 = vmatmul.mubr.f32.gmra.mxu0 %v1702
      %v1910 = vpop.f32.mrf.mxu0
      %v1911 = vadd.f32 %v1841, %v1910
      %v1912 = vpop.f32.mrf.mxu0
      %1913 = vdwg.mxu0
      %1914 = vmatprep.subr.mxu0 0.0
      %1915 = vmatpush1.msra.mxu0 0.0
      %1916 = vmatprep.subr.mxu0 0.0
      %1917 = vmatpush1.msra.mxu0 0.0
      %1918 = vmatprep.subr.mxu0 0.0
      %1919 = vmatpush1.msra.mxu0 0.0
      %1920 = vmatprep.subr.mxu0 0.0
      %1921 = vmatpush1.msra.mxu0 0.0
      %1922 = vmatprep.subr.mxu0 0.0
      %1923 = vmatpush1.msra.mxu0 0.0
      %1924 = vmatprep.subr.mxu0 0.0
      %1925 = vmatpush1.msra.mxu0 0.0
      %1926 = vmatprep.subr.mxu0 0.0
      %1927 = vmatpush1.msra.mxu0 0.0
      %1928 = vmatprep.subr.mxu0 0.0
      %1929 = vmatpush1.msra.mxu0 0.0
      %1930 = vmatprep.subr.mxu0 0.0
      %1931 = vmatpush1.msra.mxu0 0.0
      %1932 = vmatprep.subr.mxu0 0.0
      %1933 = vmatpush1.msra.mxu0 0.0
      %1934 = vmatprep.subr.mxu0 0.0
      %1935 = vmatpush1.msra.mxu0 0.0
      %1936 = vmatprep.subr.mxu0 0.0
      %1937 = vmatpush1.msra.mxu0 0.0
      %1938 = vmatprep.subr.mxu0 0.0
      %1939 = vmatpush1.msra.mxu0 0.0
      %1940 = vmatprep.subr.mxu0 0.0
      %1941 = vmatpush1.msra.mxu0 0.0
      %1942 = vmatprep.subr.mxu0 0.0
      %1943 = vmatpush1.msra.mxu0 %v774
      %1944 = vmatprep.subr.mxu0 0.0
      %1945 = vmatpush1.msra.mxu0 %v773
      %1946 = vmatprep.subr.mxu0 0.0
      %1947 = vmatpush2.msra.mxu0 0.0
      %1948 = vmatprep.subr.mxu0 0.0
      %1949 = vmatpush2.msra.mxu0 0.0
      %1950 = vmatprep.subr.mxu0 0.0
      %1951 = vmatpush2.msra.mxu0 0.0
      %1952 = vmatprep.subr.mxu0 0.0
      %1953 = vmatpush2.msra.mxu0 0.0
      %1954 = vmatprep.subr.mxu0 0.0
      %1955 = vmatpush2.msra.mxu0 0.0
      %1956 = vmatprep.subr.mxu0 0.0
      %1957 = vmatpush2.msra.mxu0 0.0
      %1958 = vmatprep.subr.mxu0 0.0
      %1959 = vmatpush2.msra.mxu0 0.0
      %1960 = vmatprep.subr.mxu0 0.0
      %1961 = vmatpush2.msra.mxu0 0.0
      %1962 = vmatprep.subr.mxu0 0.0
      %1963 = vmatpush2.msra.mxu0 0.0
      %1964 = vmatprep.subr.mxu0 0.0
      %1965 = vmatpush2.msra.mxu0 0.0
      %1966 = vmatprep.subr.mxu0 0.0
      %1967 = vmatpush2.msra.mxu0 0.0
      %1968 = vmatprep.subr.mxu0 0.0
      %1969 = vmatpush2.msra.mxu0 0.0
      %1970 = vmatprep.subr.mxu0 0.0
      %1971 = vmatpush2.msra.mxu0 0.0
      %1972 = vmatprep.subr.mxu0 0.0
      %1973 = vmatpush2.msra.mxu0 0.0
      %1974 = vmatprep.subr.mxu0 0.0
      %1975 = vmatpush2.msra.mxu0 0.0
      %1976 = vmatprep.subr.mxu0 0.0
      %1977 = vmatpush2.msra.mxu0 0.0
      %1978 = vmatprep.mubr.f32.mxu0 0.0
      %1979 = vmatmul.mubr.f32.gmra.mxu0 %v1058
      %v1980 = vpop.f32.mrf.mxu0
      %v1981 = vadd.f32 %v1911, %v1980
      %v1982 = vpop.f32.mrf.mxu0
      %1983 = vdwg.mxu0
      %v1985 = vlaneseq
      %v1986 = vshrl.u32 %v1985, 7
      %v1987 = vsub.s32 0, %v1986
      %v1988 = vrot.slane %v841, %v1987
      %v1990 = vadd.f32 %v1981, %v1988
      %v1991 = vmax.f32 %v1990, 0.0
      %v1992 = vld [vmem:[%s13] sm:$0xff]
      %v1993 = vld [vmem:[%s13 + $0x8] sm:$0xff]
      %v1994 = vld [vmem:[%s13 + $0x10] sm:$0xff]
      %v1995 = vld [vmem:[%s13 + $0x18] sm:$0xff]
      %v1996 = vld [vmem:[%s14] sm:$0x1]
      %v1998 = vlaneseq
      %v1999 = vshrl.u32 %v1998, 7
      %v2000 = vsub.s32 0, %v1999
      %v2001 = vrot.slane %v1996, %v2000
      %v2004 = vsel %vm658, %v1991, 0
      %2006 = vmatprep.subr.mxu0 0.0
      %2007 = vmatpush1.msra.mxu0 0.0
      %2008 = vmatprep.subr.mxu0 0.0
      %2009 = vmatpush1.msra.mxu0 0.0
      %2010 = vmatprep.subr.mxu0 0.0
      %2011 = vmatpush1.msra.mxu0 0.0
      %2012 = vmatprep.subr.mxu0 0.0
      %2013 = vmatpush1.msra.mxu0 0.0
      %2014 = vmatprep.subr.mxu0 0.0
      %2015 = vmatpush1.msra.mxu0 0.0
      %2016 = vmatprep.subr.mxu0 0.0
      %2017 = vmatpush1.msra.mxu0 0.0
      %2018 = vmatprep.subr.mxu0 0.0
      %2019 = vmatpush1.msra.mxu0 0.0
      %2020 = vmatprep.subr.mxu0 0.0
      %2021 = vmatpush1.msra.mxu0 0.0
      %2022 = vmatprep.subr.mxu0 0.0
      %2023 = vmatpush1.msra.mxu0 0.0
      %2024 = vmatprep.subr.mxu0 0.0
      %2025 = vmatpush1.msra.mxu0 0.0
      %2026 = vmatprep.subr.mxu0 0.0
      %2027 = vmatpush1.msra.mxu0 0.0
      %2028 = vmatprep.subr.mxu0 0.0
      %2029 = vmatpush1.msra.mxu0 0.0
      %2030 = vmatprep.subr.mxu0 0.0
      %2031 = vmatpush1.msra.mxu0 %v1995
      %2032 = vmatprep.subr.mxu0 0.0
      %2033 = vmatpush1.msra.mxu0 %v1994
      %2034 = vmatprep.subr.mxu0 0.0
      %2035 = vmatpush1.msra.mxu0 %v1993
      %2036 = vmatprep.subr.mxu0 0.0
      %2037 = vmatpush1.msra.mxu0 %v1992
      %2038 = vmatprep.subr.mxu0 0.0
      %2039 = vmatpush2.msra.mxu0 0.0
      %2040 = vmatprep.subr.mxu0 0.0
      %2041 = vmatpush2.msra.mxu0 0.0
      %2042 = vmatprep.subr.mxu0 0.0
      %2043 = vmatpush2.msra.mxu0 0.0
      %2044 = vmatprep.subr.mxu0 0.0
      %2045 = vmatpush2.msra.mxu0 0.0
      %2046 = vmatprep.subr.mxu0 0.0
      %2047 = vmatpush2.msra.mxu0 0.0
      %2048 = vmatprep.subr.mxu0 0.0
      %2049 = vmatpush2.msra.mxu0 0.0
      %2050 = vmatprep.subr.mxu0 0.0
      %2051 = vmatpush2.msra.mxu0 0.0
      %2052 = vmatprep.subr.mxu0 0.0
      %2053 = vmatpush2.msra.mxu0 0.0
      %2054 = vmatprep.subr.mxu0 0.0
      %2055 = vmatpush2.msra.mxu0 0.0
      %2056 = vmatprep.subr.mxu0 0.0
      %2057 = vmatpush2.msra.mxu0 0.0
      %2058 = vmatprep.subr.mxu0 0.0
      %2059 = vmatpush2.msra.mxu0 0.0
      %2060 = vmatprep.subr.mxu0 0.0
      %2061 = vmatpush2.msra.mxu0 0.0
      %2062 = vmatprep.subr.mxu0 0.0
      %2063 = vmatpush2.msra.mxu0 0.0
      %2064 = vmatprep.subr.mxu0 0.0
      %2065 = vmatpush2.msra.mxu0 0.0
      %2066 = vmatprep.subr.mxu0 0.0
      %2067 = vmatpush2.msra.mxu0 0.0
      %2068 = vmatprep.subr.mxu0 0.0
      %2069 = vmatpush2.msra.mxu0 0.0
      %2070 = vmatprep.mubr.f32.mxu0 0.0
      %2071 = vmatmul.mubr.f32.gmra.mxu0 %v2004
      %v2072 = vpop.f32.mrf.mxu0
      %v2073 = vadd.f32 %v2001, %v2072
      %v2074 = vpop.f32.mrf.mxu0
      %2075 = vdwg.mxu0
      %v2076 = vmax.f32 %v2073, 0.0
      %v2077 = vld [vmem:[%s15] sm:$0xff]
      %v2078 = vld [vmem:[%s15 + $0x8] sm:$0xff]
      %v2079 = vld [vmem:[%s16] sm:$0x1]
      %v2081 = vlaneseq
      %v2082 = vshrl.u32 %v2081, 7
      %v2083 = vsub.s32 0, %v2082
      %v2084 = vrot.slane %v2079, %v2083
      %v2087 = vsel %vm572, %v2076, 0
      %2089 = vmatprep.subr.mxu0 0.0
      %2090 = vmatpush1.msra.mxu0 0.0
      %2091 = vmatprep.subr.mxu0 0.0
      %2092 = vmatpush1.msra.mxu0 0.0
      %2093 = vmatprep.subr.mxu0 0.0
      %2094 = vmatpush1.msra.mxu0 0.0
      %2095 = vmatprep.subr.mxu0 0.0
      %2096 = vmatpush1.msra.mxu0 0.0
      %2097 = vmatprep.subr.mxu0 0.0
      %2098 = vmatpush1.msra.mxu0 0.0
      %2099 = vmatprep.subr.mxu0 0.0
      %2100 = vmatpush1.msra.mxu0 0.0
      %2101 = vmatprep.subr.mxu0 0.0
      %2102 = vmatpush1.msra.mxu0 0.0
      %2103 = vmatprep.subr.mxu0 0.0
      %2104 = vmatpush1.msra.mxu0 0.0
      %2105 = vmatprep.subr.mxu0 0.0
      %2106 = vmatpush1.msra.mxu0 0.0
      %2107 = vmatprep.subr.mxu0 0.0
      %2108 = vmatpush1.msra.mxu0 0.0
      %2109 = vmatprep.subr.mxu0 0.0
      %2110 = vmatpush1.msra.mxu0 0.0
      %2111 = vmatprep.subr.mxu0 0.0
      %2112 = vmatpush1.msra.mxu0 0.0
      %2113 = vmatprep.subr.mxu0 0.0
      %2114 = vmatpush1.msra.mxu0 0.0
      %2115 = vmatprep.subr.mxu0 0.0
      %2116 = vmatpush1.msra.mxu0 0.0
      %2117 = vmatprep.subr.mxu0 0.0
      %2118 = vmatpush1.msra.mxu0 %v2078
      %2119 = vmatprep.subr.mxu0 0.0
      %2120 = vmatpush1.msra.mxu0 %v2077
      %2121 = vmatprep.subr.mxu0 0.0
      %2122 = vmatpush2.msra.mxu0 0.0
      %2123 = vmatprep.subr.mxu0 0.0
      %2124 = vmatpush2.msra.mxu0 0.0
      %2125 = vmatprep.subr.mxu0 0.0
      %2126 = vmatpush2.msra.mxu0 0.0
      %2127 = vmatprep.subr.mxu0 0.0
      %2128 = vmatpush2.msra.mxu0 0.0
      %2129 = vmatprep.subr.mxu0 0.0
      %2130 = vmatpush2.msra.mxu0 0.0
      %2131 = vmatprep.subr.mxu0 0.0
      %2132 = vmatpush2.msra.mxu0 0.0
      %2133 = vmatprep.subr.mxu0 0.0
      %2134 = vmatpush2.msra.mxu0 0.0
      %2135 = vmatprep.subr.mxu0 0.0
      %2136 = vmatpush2.msra.mxu0 0.0
      %2137 = vmatprep.subr.mxu0 0.0
      %2138 = vmatpush2.msra.mxu0 0.0
      %2139 = vmatprep.subr.mxu0 0.0
      %2140 = vmatpush2.msra.mxu0 0.0
      %2141 = vmatprep.subr.mxu0 0.0
      %2142 = vmatpush2.msra.mxu0 0.0
      %2143 = vmatprep.subr.mxu0 0.0
      %2144 = vmatpush2.msra.mxu0 0.0
      %2145 = vmatprep.subr.mxu0 0.0
      %2146 = vmatpush2.msra.mxu0 0.0
      %2147 = vmatprep.subr.mxu0 0.0
      %2148 = vmatpush2.msra.mxu0 0.0
      %2149 = vmatprep.subr.mxu0 0.0
      %2150 = vmatpush2.msra.mxu0 0.0
      %2151 = vmatprep.subr.mxu0 0.0
      %2152 = vmatpush2.msra.mxu0 0.0
      %2153 = vmatprep.mubr.f32.mxu0 0.0
      %2154 = vmatmul.mubr.f32.gmra.mxu0 %v2087
      %v2155 = vpop.f32.mrf.mxu0
      %v2156 = vadd.f32 %v2084, %v2155
      %v2157 = vpop.f32.mrf.mxu0
      %2158 = vdwg.mxu0
      %2159 = vst [vmem:[%s560] sm:$0xff] %v2156
      %p2160 = scmp.lt.s32.totalorder %s28, 3
      %s2161 = scalar_select %p2160, %s28, 3
      %s2162 = smul.addr %s2161, 8
      %s2163 = scalar_lea.vmem %s17, %s2162
      // Predicated region
      $region89: #{dlrm_forward.1} parent=87 // pred_check
        %p2164 = pneg %p413
      $region90: #{dlrm_forward.1} parent=87 // pred_check_branch
        %2166 = sbr.rel (%p2164) target = $region92
      $region91: #{dlrm_forward.1} parent=87 // pred_region
        _
      $region92: #{dlrm_forward.1} parent=87 // pred_fallthru
        _
    $region88: #{dlrm_forward.1} parent=5 // pred_fallthru
      _
    %p2167 = scmp.le.s32.totalorder 2, %s23
    // Predicated region
    $region93: #{dlrm_forward.1} parent=5 // pred_check
      %p2168 = pneg %p2167
    $region94: #{dlrm_forward.1} parent=5 // pred_check_branch
      %2170 = sbr.rel (%p2168) target = $region96
    $region95: #{dlrm_forward.1} parent=5 // pred_region
      %s2171 = ssub.s32 %s23, 2
      // Predicated region
      $region97: #{dlrm_forward.1} parent=95 // pred_check
        %p2172 = pneg %p419
      $region98: #{dlrm_forward.1} parent=95 // pred_check_branch
        %2174 = sbr.rel (%p2172) target = $region100
      $region99: #{dlrm_forward.1} parent=95 // pred_region
        %p2175 = scmp.lt.s32.totalorder %s29, 3
        %s2176 = scalar_select %p2175, %s29, 3
        %s2177 = smul.addr %s2176, 8
        %s2178 = scalar_lea.vmem %s17, %s2177
      $region100: #{dlrm_forward.1} parent=95 // pred_fallthru
        _
    $region96: #{dlrm_forward.1} parent=5 // pred_fallthru
      _
  $region6: #{dlrm_forward.1} parent=0 // loop_footer
    %s27 = sadd.s32 1, %s23
  $region7: #{dlrm_forward.1} parent=0 // loop_footer_branch
    %22 = sbr.rel target = $region3
  $region8: #{dlrm_forward.1} parent=0 // loop_exit
    _

</llo_original>
